<compile_context>
chip_gen: v7x
topology: tpu7x:2x2x1
jax: 0.10.0
libtpu: 0.0.40
codegen_flags: <defaults>
</compile_context>

<pallas_src>
import functools

import jax
import jax.numpy as jnp
from jax.experimental import pallas as pl
from jax.experimental.pallas import tpu as pltpu


def _round_up(v, m):
    return (v + m - 1) // m * m


# ----------------------------- Pallas kernel ------------------------------ #
def edgeconv_kernel(x_ref, idx_ref, wc_ref, wn_ref, b_ref, out_ref, *,
                    cout, use_take_gather):
    """One batch per grid step; channel-major (transposed) layout throughout.

    x_ref   : (1, C, Np)     bf16   point features, points on lanes
    idx_ref : (1, Keff, Np)  int32  neighbor indices (self removed), lane-dense
    wc_ref  : (Coutp, C)     bf16   W_ctr^T = (W[:C] - W[C:])^T
    wn_ref  : (Coutp, C)     bf16   W_nbr^T = W[C:]^T
    b_ref   : (Coutp, 1)     f32    bias column
    out_ref : (1, Cout, Np)  f32    max_j ReLU(z_c + z_n[:, j])  (NCHW order)
    """
    xT = x_ref[0]                                             # (C, Np) bf16
    keff = idx_ref.shape[1]

    # Per-point projections, computed once per batch on the MXU (f32 accum).
    zc = jnp.dot(wc_ref[...], xT, preferred_element_type=jnp.float32) + b_ref[...]
    zn = jnp.dot(wn_ref[...], xT, preferred_element_type=jnp.float32)

    if not use_take_gather:
        # Fallback path only: exact one-hot row-select on the MXU.
        src = jax.lax.broadcasted_iota(jnp.int32, (zn.shape[1], zn.shape[1]), 0)

    def body(kk, m):
        idx_row = idx_ref[0, pl.ds(kk, 1), :]                 # (1, Np) int32
        if use_take_gather:
            # In-VMEM dynamic gather of z_n columns (points are on lanes).
            g = jnp.take_along_axis(
                zn, jnp.broadcast_to(idx_row, zn.shape), axis=1,
                mode="promise_in_bounds")
        else:
            onehot = (src == idx_row).astype(jnp.float32)     # (Np, Np) exact
            g = jnp.dot(zn, onehot, preferred_element_type=jnp.float32)
        return jnp.maximum(m, g)

    m = jax.lax.fori_loop(0, keff, body,
                          jnp.full(zn.shape, -jnp.inf, jnp.float32),
                          unroll=True)

    # ReLU after max == max of ReLU (monotone); z_c is constant over neighbors.
    out_ref[0] = jnp.maximum(zc + m, 0.0)[:cout, :]


def _gather_probe_kernel(z_ref, i_ref, o_ref):
    o_ref[...] = jnp.take_along_axis(
        z_ref[...], jnp.broadcast_to(i_ref[...], z_ref.shape), axis=1,
        mode="promise_in_bounds")


@functools.lru_cache(maxsize=None)
def take_gather_supported(coutp, np_):
    """Compile-time probe: does Mosaic lower an in-kernel lane-direction
    dynamic gather (take_along_axis on a VMEM f32 operand) at these shapes?"""
    try:
        fn = pl.pallas_call(
            _gather_probe_kernel,
            out_shape=jax.ShapeDtypeStruct((coutp, np_), jnp.float32))
        jax.jit(fn).lower(
            jax.ShapeDtypeStruct((coutp, np_), jnp.float32),
            jax.ShapeDtypeStruct((1, np_), jnp.int32)).compile()
        return True
    except Exception:
        return False


def edgeconv_pallas(xT, idxT, wcT, wnT, bias_col, *, cout, use_take_gather):
    """xT: (B,C,Np) bf16; idxT: (B,Keff,Np) int32; wcT/wnT: (Coutp,C) bf16;
    bias_col: (Coutp,1) f32  ->  (B, Cout, Np) f32 (NCHW-ordered, lane-dense)."""
    B, C, Np = xT.shape
    Keff = idxT.shape[1]
    Coutp = wcT.shape[0]

    kernel = functools.partial(edgeconv_kernel, cout=cout,
                               use_take_gather=use_take_gather)

    # Useful work only: two per-point projections + the neighbor max.
    flops = 2 * (2 * B * Coutp * C * Np) + B * Keff * Coutp * Np
    if not use_take_gather:
        flops += 2 * B * Keff * Coutp * Np * Np        # one-hot fallback matmuls
    bytes_accessed = (xT.size * 2 + idxT.size * 4 + wcT.size * 2 + wnT.size * 2
                      + bias_col.size * 4 + B * cout * Np * 4)

    # VMEM budget: double-buffered I/O blocks + in-kernel temporaries
    # (z_c, z_n, gather result, running max, broadcast indices; the (Np, Np)
    # one-hot exists only on the fallback path).
    io_bytes = 2 * (C * Np * 2 + Keff * Np * 4 + 2 * Coutp * C * 2 + Coutp * 4
                    + cout * Np * 4)
    tmp_bytes = 5 * Coutp * Np * 4 + (Np * Np * 4 if not use_take_gather else 0)
    vmem_limit = int(min(max(io_bytes + tmp_bytes + (2 << 20), 16 << 20),
                         64 << 20))

    return pl.pallas_call(
        kernel,
        out_shape=jax.ShapeDtypeStruct((B, cout, Np), jnp.float32),
        grid=(B,),
        in_specs=[
            pl.BlockSpec((1, C, Np), lambda b: (b, 0, 0)),
            pl.BlockSpec((1, Keff, Np), lambda b: (b, 0, 0)),
            pl.BlockSpec((Coutp, C), lambda b: (0, 0)),
            pl.BlockSpec((Coutp, C), lambda b: (0, 0)),
            pl.BlockSpec((Coutp, 1), lambda b: (0, 0)),
        ],
        out_specs=pl.BlockSpec((1, cout, Np), lambda b: (b, 0, 0)),
        compiler_params=pltpu.CompilerParams(
            dimension_semantics=("parallel",),
            vmem_limit_bytes=vmem_limit),
        cost_estimate=pl.CostEstimate(flops=int(flops), transcendentals=0,
                                      bytes_accessed=int(bytes_accessed)),
    )(xT, idxT, wcT, wnT, bias_col)


# --------------------------- JAX glue (kNN etc.) --------------------------- #
def dense_knn_matrix(x_bcn, k):
    """x_bcn: (B, C, N) -> nearest-neighbor indices (B, N, k) (self included)."""
    inner = -2.0 * jnp.einsum('bcn,bcm->bnm', x_bcn, x_bcn)
    sq = jnp.sum(x_bcn * x_bcn, axis=1)                      # (B, N)
    dist = sq[:, :, None] + inner + sq[:, None, :]           # (B, N, N)
    _, nn_idx = jax.lax.top_k(-dist, k)                      # (B, N, k)
    return nn_idx


def dyn_conv2d_forward(x_nchw, w, bias, *, k=9, dilation=1,
                       use_take_gather=True):
    """x_nchw: (B, C, N, 1) f32; w: (2C, Cout); bias: (1, Cout).
    Returns (B, Cout, N, 1) f32."""
    B, C, N, _ = x_nchw.shape
    Cout = w.shape[1]
    x_bcn = x_nchw[..., 0]                                   # (B, C, N) f32

    # DilatedKnn2d (self_loop=True): kNN with k*dilation neighbors, then dilate.
    nn_idx = dense_knn_matrix(x_bcn, k * dilation)           # (B, N, k*d)
    nn_idx = nn_idx[:, :, ::dilation]                        # (B, N, k)
    # remove_self_loops: the nearest entry is the point itself (distance 0).
    # An exactly-coincident duplicate in its place has identical features, so
    # dropping column 0 is numerically identical.
    nn_idx = nn_idx[:, :, 1:].astype(jnp.int32)              # (B, N, k-1)

    Coutp = _round_up(Cout, 8)          # channels sit on sublanes now
    Np = _round_up(N, 128)              # points sit on lanes (lane-dense I/O)

    # EdgeConv decomposition: [x_i, x_j - x_i] @ W + b
    #   == x_i @ (W[:C] - W[C:]) + x_j @ W[C:] + b,
    # kept transposed so the kernel emits NCHW-ordered output directly.
    wcT = jnp.pad((w[:C] - w[C:]).T,
                  ((0, Coutp - Cout), (0, 0))).astype(jnp.bfloat16)
    wnT = jnp.pad(w[C:].T, ((0, Coutp - Cout), (0, 0))).astype(jnp.bfloat16)
    bias_col = jnp.pad(bias.reshape(Cout, 1).astype(jnp.float32),
                       ((0, Coutp - Cout), (0, 0)))

    xT = jnp.pad(x_bcn.astype(jnp.bfloat16),
                 ((0, 0), (0, 0), (0, Np - N)))              # (B, C, Np)
    idxT = jnp.pad(jnp.swapaxes(nn_idx, 1, 2),
                   ((0, 0), (0, 0), (0, Np - N)))            # (B, Keff, Np)

    out = edgeconv_pallas(xT, idxT, wcT, wnT, bias_col, cout=Cout,
                          use_take_gather=use_take_gather)   # (B, Cout, Np)
    return out[:, :, :N][..., None]                          # (B, Cout, N, 1)


# --------------------------------- main ----------------------------------- #
if __name__ == "__main__":
    B, C, N = 2, 4, 16
    Cout = 8
    k = 9

    key = jax.random.PRNGKey(0)
    kx, kw, kb = jax.random.split(key, 3)

    x = jax.random.normal(kx, (B, C, N, 1), dtype=jnp.float32)
    # 1x1 conv weight (Cout, 2C) stored transposed as (2C, Cout).
    w = (jax.random.normal(kw, (2 * C, Cout), dtype=jnp.float32)
         * (1.0 / jnp.sqrt(2.0 * C)))
    bias = jax.random.normal(kb, (1, Cout), dtype=jnp.float32) * 0.1

    # One-time compile probe for the fast in-kernel gather path.
    use_take = take_gather_supported(_round_up(Cout, 8), _round_up(N, 128))

    fwd = jax.jit(functools.partial(dyn_conv2d_forward, k=k, dilation=1,
                                    use_take_gather=use_take))
    out = jax.block_until_ready(fwd(x, w, bias))
    assert out.shape == (B, Cout, N, 1), out.shape

    # Pure-f32 reference of the original EdgeConv formulation (same graph glue).
    x_bcn = x[..., 0]
    x_bnc = jnp.transpose(x_bcn, (0, 2, 1))
    nn_idx_ref = dense_knn_matrix(x_bcn, k)[:, :, 1:]
    x_j = jnp.take_along_axis(x_bnc[:, None, :, :],
                              nn_idx_ref[:, :, :, None], axis=2)   # (B,N,K-1,C)
    x_i = jnp.broadcast_to(x_bnc[:, :, None, :], x_j.shape)
    feat = jnp.concatenate([x_i, x_j - x_i], axis=-1)              # (B,N,K-1,2C)
    ref = jnp.max(jax.nn.relu(jnp.einsum('bnkc,co->bnko', feat, w) + bias[0]),
                  axis=2)
    ref = jnp.transpose(ref, (0, 2, 1))[..., None]

    # Kernel path uses bf16 inputs with f32 accumulation -> loose tolerance.
    err = float(jnp.max(jnp.abs(out - ref)))
    assert jnp.allclose(out, ref, atol=2e-2, rtol=2e-2), err

    print("KERNEL_OK")
</pallas_src>

<mosaic_0001>
module attributes {stable_mosaic.version = 11 : i64} {
  func.func @edgeconv_kernel(%arg0: i32, %arg1: memref<1x4x128xbf16, #tpu.memory_space<vmem>>, %arg2: memref<1x8x128xi32, #tpu.memory_space<vmem>>, %arg3: memref<8x4xbf16, #tpu.memory_space<vmem>>, %arg4: memref<8x4xbf16, #tpu.memory_space<vmem>>, %arg5: memref<8x1xf32, #tpu.memory_space<vmem>>, %arg6: memref<1x8x128xf32, #tpu.memory_space<vmem>>) attributes {dimension_semantics = [#tpu.dimension_semantics<parallel>], iteration_bounds = array<i64: 2>, scalar_prefetch = 0 : i64, scratch_operands = 0 : i64, tpu.core_type = #tpu.core_type<tc>, window_params = [{transform_indices = @transform_0, window_bounds = array<i64: 1, 4, 128>}, {transform_indices = @transform_1, window_bounds = array<i64: 1, 8, 128>}, {pipeline_mode = #tpu.pipeline_mode<synchronous>, transform_indices = @transform_2, window_bounds = array<i64: 8, 4>}, {pipeline_mode = #tpu.pipeline_mode<synchronous>, transform_indices = @transform_3, window_bounds = array<i64: 8, 4>}, {pipeline_mode = #tpu.pipeline_mode<synchronous>, transform_indices = @transform_4, window_bounds = array<i64: 8, 1>}, {transform_indices = @transform_5, window_bounds = array<i64: 1, 8, 128>}]} {
    %c0 = arith.constant 0 : index
    %c0_0 = arith.constant 0 : index
    %c0_1 = arith.constant 0 : index
    %0 = vector.load %arg1[%c0, %c0_0, %c0_1] : memref<1x4x128xbf16, #tpu.memory_space<vmem>>, vector<1x4x128xbf16>
    %1 = vector.shape_cast %0 : vector<1x4x128xbf16> to vector<4x128xbf16>
    %c0_2 = arith.constant 0 : index
    %c0_3 = arith.constant 0 : index
    %2 = vector.load %arg3[%c0_2, %c0_3] : memref<8x4xbf16, #tpu.memory_space<vmem>>, vector<8x4xbf16>
    %cst = arith.constant dense<0.000000e+00> : vector<8x128xf32>
    %3 = tpu.matmul %2, %1, %cst {dimension_numbers = #tpu.dot_dimension_numbers<[1], [0], [0], [1], [0, 0, 1, 1], [], []>} : vector<8x4xbf16>, vector<4x128xbf16>, vector<8x128xf32> -> vector<8x128xf32>
    %c0_4 = arith.constant 0 : index
    %c0_5 = arith.constant 0 : index
    %4 = vector.load %arg5[%c0_4, %c0_5] : memref<8x1xf32, #tpu.memory_space<vmem>>, vector<8x1xf32>
    %5 = vector.broadcast %4 : vector<8x1xf32> to vector<8x128xf32>
    %6 = arith.addf %3, %5 : vector<8x128xf32>
    %c0_6 = arith.constant 0 : index
    %c0_7 = arith.constant 0 : index
    %7 = vector.load %arg4[%c0_6, %c0_7] : memref<8x4xbf16, #tpu.memory_space<vmem>>, vector<8x4xbf16>
    %cst_8 = arith.constant dense<0.000000e+00> : vector<8x128xf32>
    %8 = tpu.matmul %7, %1, %cst_8 {dimension_numbers = #tpu.dot_dimension_numbers<[1], [0], [0], [1], [0, 0, 1, 1], [], []>} : vector<8x4xbf16>, vector<4x128xbf16>, vector<8x128xf32> -> vector<8x128xf32>
    %9 = tpu.iota {dimensions = array<i32: 0>} : vector<128x128xi32>
    %cst_9 = arith.constant 0xFF800000 : f32
    %10 = vector.broadcast %cst_9 : f32 to vector<8x128xf32>
    %c0_i32 = arith.constant 0 : i32
    %c0_10 = arith.constant 0 : index
    %11 = arith.index_cast %c0_i32 : i32 to index
    %c0_11 = arith.constant 0 : index
    %12 = vector.load %arg2[%c0_10, %11, %c0_11] : memref<1x8x128xi32, #tpu.memory_space<vmem>>, vector<1x1x128xi32>
    %13 = vector.shape_cast %12 : vector<1x1x128xi32> to vector<1x128xi32>
    %14 = vector.broadcast %13 : vector<1x128xi32> to vector<128x128xi32>
    %15 = arith.cmpi eq, %9, %14 : vector<128x128xi32>
    %16 = arith.extui %15 : vector<128x128xi1> to vector<128x128xi32>
    %17 = arith.sitofp %16 : vector<128x128xi32> to vector<128x128xf32>
    %cst_12 = arith.constant dense<0.000000e+00> : vector<8x128xf32>
    %18 = tpu.matmul %8, %17, %cst_12 {dimension_numbers = #tpu.dot_dimension_numbers<[1], [0], [0], [1], [0, 0, 1, 1], [], []>} : vector<8x128xf32>, vector<128x128xf32>, vector<8x128xf32> -> vector<8x128xf32>
    %19 = arith.maximumf %10, %18 : vector<8x128xf32>
    %c1_i32 = arith.constant 1 : i32
    %c0_13 = arith.constant 0 : index
    %20 = arith.index_cast %c1_i32 : i32 to index
    %c0_14 = arith.constant 0 : index
    %21 = vector.load %arg2[%c0_13, %20, %c0_14] : memref<1x8x128xi32, #tpu.memory_space<vmem>>, vector<1x1x128xi32>
    %22 = vector.shape_cast %21 : vector<1x1x128xi32> to vector<1x128xi32>
    %23 = vector.broadcast %22 : vector<1x128xi32> to vector<128x128xi32>
    %24 = arith.cmpi eq, %9, %23 : vector<128x128xi32>
    %25 = arith.extui %24 : vector<128x128xi1> to vector<128x128xi32>
    %26 = arith.sitofp %25 : vector<128x128xi32> to vector<128x128xf32>
    %cst_15 = arith.constant dense<0.000000e+00> : vector<8x128xf32>
    %27 = tpu.matmul %8, %26, %cst_15 {dimension_numbers = #tpu.dot_dimension_numbers<[1], [0], [0], [1], [0, 0, 1, 1], [], []>} : vector<8x128xf32>, vector<128x128xf32>, vector<8x128xf32> -> vector<8x128xf32>
    %28 = arith.maximumf %19, %27 : vector<8x128xf32>
    %c2_i32 = arith.constant 2 : i32
    %c0_16 = arith.constant 0 : index
    %29 = arith.index_cast %c2_i32 : i32 to index
    %c0_17 = arith.constant 0 : index
    %30 = vector.load %arg2[%c0_16, %29, %c0_17] : memref<1x8x128xi32, #tpu.memory_space<vmem>>, vector<1x1x128xi32>
    %31 = vector.shape_cast %30 : vector<1x1x128xi32> to vector<1x128xi32>
    %32 = vector.broadcast %31 : vector<1x128xi32> to vector<128x128xi32>
    %33 = arith.cmpi eq, %9, %32 : vector<128x128xi32>
    %34 = arith.extui %33 : vector<128x128xi1> to vector<128x128xi32>
    %35 = arith.sitofp %34 : vector<128x128xi32> to vector<128x128xf32>
    %cst_18 = arith.constant dense<0.000000e+00> : vector<8x128xf32>
    %36 = tpu.matmul %8, %35, %cst_18 {dimension_numbers = #tpu.dot_dimension_numbers<[1], [0], [0], [1], [0, 0, 1, 1], [], []>} : vector<8x128xf32>, vector<128x128xf32>, vector<8x128xf32> -> vector<8x128xf32>
    %37 = arith.maximumf %28, %36 : vector<8x128xf32>
    %c3_i32 = arith.constant 3 : i32
    %c0_19 = arith.constant 0 : index
    %38 = arith.index_cast %c3_i32 : i32 to index
    %c0_20 = arith.constant 0 : index
    %39 = vector.load %arg2[%c0_19, %38, %c0_20] : memref<1x8x128xi32, #tpu.memory_space<vmem>>, vector<1x1x128xi32>
    %40 = vector.shape_cast %39 : vector<1x1x128xi32> to vector<1x128xi32>
    %41 = vector.broadcast %40 : vector<1x128xi32> to vector<128x128xi32>
    %42 = arith.cmpi eq, %9, %41 : vector<128x128xi32>
    %43 = arith.extui %42 : vector<128x128xi1> to vector<128x128xi32>
    %44 = arith.sitofp %43 : vector<128x128xi32> to vector<128x128xf32>
    %cst_21 = arith.constant dense<0.000000e+00> : vector<8x128xf32>
    %45 = tpu.matmul %8, %44, %cst_21 {dimension_numbers = #tpu.dot_dimension_numbers<[1], [0], [0], [1], [0, 0, 1, 1], [], []>} : vector<8x128xf32>, vector<128x128xf32>, vector<8x128xf32> -> vector<8x128xf32>
    %46 = arith.maximumf %37, %45 : vector<8x128xf32>
    %c4_i32 = arith.constant 4 : i32
    %c0_22 = arith.constant 0 : index
    %47 = arith.index_cast %c4_i32 : i32 to index
    %c0_23 = arith.constant 0 : index
    %48 = vector.load %arg2[%c0_22, %47, %c0_23] : memref<1x8x128xi32, #tpu.memory_space<vmem>>, vector<1x1x128xi32>
    %49 = vector.shape_cast %48 : vector<1x1x128xi32> to vector<1x128xi32>
    %50 = vector.broadcast %49 : vector<1x128xi32> to vector<128x128xi32>
    %51 = arith.cmpi eq, %9, %50 : vector<128x128xi32>
    %52 = arith.extui %51 : vector<128x128xi1> to vector<128x128xi32>
    %53 = arith.sitofp %52 : vector<128x128xi32> to vector<128x128xf32>
    %cst_24 = arith.constant dense<0.000000e+00> : vector<8x128xf32>
    %54 = tpu.matmul %8, %53, %cst_24 {dimension_numbers = #tpu.dot_dimension_numbers<[1], [0], [0], [1], [0, 0, 1, 1], [], []>} : vector<8x128xf32>, vector<128x128xf32>, vector<8x128xf32> -> vector<8x128xf32>
    %55 = arith.maximumf %46, %54 : vector<8x128xf32>
    %c5_i32 = arith.constant 5 : i32
    %c0_25 = arith.constant 0 : index
    %56 = arith.index_cast %c5_i32 : i32 to index
    %c0_26 = arith.constant 0 : index
    %57 = vector.load %arg2[%c0_25, %56, %c0_26] : memref<1x8x128xi32, #tpu.memory_space<vmem>>, vector<1x1x128xi32>
    %58 = vector.shape_cast %57 : vector<1x1x128xi32> to vector<1x128xi32>
    %59 = vector.broadcast %58 : vector<1x128xi32> to vector<128x128xi32>
    %60 = arith.cmpi eq, %9, %59 : vector<128x128xi32>
    %61 = arith.extui %60 : vector<128x128xi1> to vector<128x128xi32>
    %62 = arith.sitofp %61 : vector<128x128xi32> to vector<128x128xf32>
    %cst_27 = arith.constant dense<0.000000e+00> : vector<8x128xf32>
    %63 = tpu.matmul %8, %62, %cst_27 {dimension_numbers = #tpu.dot_dimension_numbers<[1], [0], [0], [1], [0, 0, 1, 1], [], []>} : vector<8x128xf32>, vector<128x128xf32>, vector<8x128xf32> -> vector<8x128xf32>
    %64 = arith.maximumf %55, %63 : vector<8x128xf32>
    %c6_i32 = arith.constant 6 : i32
    %c0_28 = arith.constant 0 : index
    %65 = arith.index_cast %c6_i32 : i32 to index
    %c0_29 = arith.constant 0 : index
    %66 = vector.load %arg2[%c0_28, %65, %c0_29] : memref<1x8x128xi32, #tpu.memory_space<vmem>>, vector<1x1x128xi32>
    %67 = vector.shape_cast %66 : vector<1x1x128xi32> to vector<1x128xi32>
    %68 = vector.broadcast %67 : vector<1x128xi32> to vector<128x128xi32>
    %69 = arith.cmpi eq, %9, %68 : vector<128x128xi32>
    %70 = arith.extui %69 : vector<128x128xi1> to vector<128x128xi32>
    %71 = arith.sitofp %70 : vector<128x128xi32> to vector<128x128xf32>
    %cst_30 = arith.constant dense<0.000000e+00> : vector<8x128xf32>
    %72 = tpu.matmul %8, %71, %cst_30 {dimension_numbers = #tpu.dot_dimension_numbers<[1], [0], [0], [1], [0, 0, 1, 1], [], []>} : vector<8x128xf32>, vector<128x128xf32>, vector<8x128xf32> -> vector<8x128xf32>
    %73 = arith.maximumf %64, %72 : vector<8x128xf32>
    %c7_i32 = arith.constant 7 : i32
    %c0_31 = arith.constant 0 : index
    %74 = arith.index_cast %c7_i32 : i32 to index
    %c0_32 = arith.constant 0 : index
    %75 = vector.load %arg2[%c0_31, %74, %c0_32] : memref<1x8x128xi32, #tpu.memory_space<vmem>>, vector<1x1x128xi32>
    %76 = vector.shape_cast %75 : vector<1x1x128xi32> to vector<1x128xi32>
    %77 = vector.broadcast %76 : vector<1x128xi32> to vector<128x128xi32>
    %78 = arith.cmpi eq, %9, %77 : vector<128x128xi32>
    %79 = arith.extui %78 : vector<128x128xi1> to vector<128x128xi32>
    %80 = arith.sitofp %79 : vector<128x128xi32> to vector<128x128xf32>
    %cst_33 = arith.constant dense<0.000000e+00> : vector<8x128xf32>
    %81 = tpu.matmul %8, %80, %cst_33 {dimension_numbers = #tpu.dot_dimension_numbers<[1], [0], [0], [1], [0, 0, 1, 1], [], []>} : vector<8x128xf32>, vector<128x128xf32>, vector<8x128xf32> -> vector<8x128xf32>
    %82 = arith.maximumf %73, %81 : vector<8x128xf32>
    %c8_i32 = arith.constant 8 : i32
    %83 = arith.addf %6, %82 : vector<8x128xf32>
    %cst_34 = arith.constant 0.000000e+00 : f32
    %84 = vector.broadcast %cst_34 : f32 to vector<8x128xf32>
    %85 = arith.maximumf %83, %84 : vector<8x128xf32>
    %c0_35 = arith.constant 0 : index
    %c0_36 = arith.constant 0 : index
    %c0_37 = arith.constant 0 : index
    %86 = vector.load %arg6[%c0_35, %c0_36, %c0_37] : memref<1x8x128xf32, #tpu.memory_space<vmem>>, vector<1x8x128xf32>
    %87 = vector.shape_cast %86 : vector<1x8x128xf32> to vector<8x128xf32>
    %88 = vector.shape_cast %85 : vector<8x128xf32> to vector<1x8x128xf32>
    tpu.vector_store %arg6[%c0_35, %c0_36, %c0_37], %88 {strides = array<i32>} : memref<1x8x128xf32, #tpu.memory_space<vmem>>, vector<1x8x128xf32>,
    return
  }
  func.func @transform_0(%arg0: i32) -> (i32, i32, i32) {
    %c0_i32 = arith.constant 0 : i32
    %c0_i32_0 = arith.constant 0 : i32
    %c0_i32_1 = arith.constant 0 : i32
    return %arg0, %c0_i32, %c0_i32_0 : i32, i32, i32
  }
  func.func @transform_1(%arg0: i32) -> (i32, i32, i32) {
    %c0_i32 = arith.constant 0 : i32
    %c0_i32_0 = arith.constant 0 : i32
    %c0_i32_1 = arith.constant 0 : i32
    return %arg0, %c0_i32, %c0_i32_0 : i32, i32, i32
  }
  func.func @transform_2(%arg0: i32) -> (i32, i32) {
    %c0_i32 = arith.constant 0 : i32
    %c0_i32_0 = arith.constant 0 : i32
    %c0_i32_1 = arith.constant 0 : i32
    return %c0_i32, %c0_i32_0 : i32, i32
  }
  func.func @transform_3(%arg0: i32) -> (i32, i32) {
    %c0_i32 = arith.constant 0 : i32
    %c0_i32_0 = arith.constant 0 : i32
    %c0_i32_1 = arith.constant 0 : i32
    return %c0_i32, %c0_i32_0 : i32, i32
  }
  func.func @transform_4(%arg0: i32) -> (i32, i32) {
    %c0_i32 = arith.constant 0 : i32
    %c0_i32_0 = arith.constant 0 : i32
    %c0_i32_1 = arith.constant 0 : i32
    return %c0_i32, %c0_i32_0 : i32, i32
  }
  func.func @transform_5(%arg0: i32) -> (i32, i32, i32) {
    %c0_i32 = arith.constant 0 : i32
    %c0_i32_0 = arith.constant 0 : i32
    %c0_i32_1 = arith.constant 0 : i32
    return %arg0, %c0_i32, %c0_i32_0 : i32, i32, i32
  }
}

</mosaic_0001>

<llo_original>
// kernel: dyn_conv2d_forward.1
$region0: #{dyn_conv2d_forward.1}
  #allocation0 [shape = 'u32[]', space=smem, size = 0x4, offset = 0x4, fixed_abs, tag = 'smem constant byte address 0x4 - core index']
  #allocation1 [shape = 'u32[144,128]{1,0:T(1,128)}', space=vmem, size = 0x12000, scoped, tag = 'internal scratch']
  %s0 = inlined_call_operand.vmem [shape: bf16[2,4,128], index: 0, kind: input, shape index: {}]
  %s1 = inlined_call_operand.vmem [shape: s32[2,8,128], index: 1, kind: input, shape index: {}]
  %s2 = inlined_call_operand.vmem [shape: bf16[8,4], index: 2, kind: input, shape index: {}]
  %s3 = inlined_call_operand.vmem [shape: bf16[8,4], index: 3, kind: input, shape index: {}]
  %s4 = inlined_call_operand.vmem [shape: f32[8,1], index: 4, kind: input, shape index: {}]
  %s5 = inlined_call_operand.hbm [shape: f32[2,8,128], index: 5, kind: output, shape index: {}]
  %s6 = sld [smem:[#allocation0]]
  $region53: #{dyn_conv2d_forward.1} parent=0
    _
  %s8 = ssub.s32 1, %s6
  %s9 = scalar_select 0, %s8, %s6
  $region1: #{dyn_conv2d_forward.1} parent=0
    #allocation2 [shape = 'u8[8192]{0}', space=vmem, size = 0x2000, scoped, tag = 'output window, operand 0']
    #allocation3 [shape = 's32[2]{0}', space=sflag, size = 0x8, scoped, tag = 'scoped memory for dyn_conv2d_forward.1']
    %10 = vsyncpa [#allocation3], 0
    %s11 = scalar_lea.sflag [#allocation3], 1
    %12 = vsyncpa %s11, 0
    loop: start=0, step=1, limit=4
    $region2: #{dyn_conv2d_forward.1} parent=1 // loop_pre_header
      _
    $region3: #{dyn_conv2d_forward.1} parent=1 // loop_header
      %s14 = sphi 0, %s18
      %p15 = scmp.ge.s32.totalorder %s14, 4
      %s24 = sphi 0, %s26
      %s27 = sphi 0, %s24
      %s28 = sphi 0, %s27
      %s44 = sphi 0, %s28
      %s50 = sphi 0, %s52
      %s53 = sphi 0, %s50
      %s54 = sphi 0, %s53
      %s70 = sphi 0, %s54
      %s74 = sphi 0, %s74
      %s76 = sphi 0, %s74
      %s77 = sphi 0, %s76
      %s91 = sphi 0, %s77
      %s95 = sphi 0, %s95
      %s97 = sphi 0, %s95
      %s98 = sphi 0, %s97
      %s112 = sphi 0, %s98
      %s116 = sphi 0, %s116
      %s118 = sphi 0, %s116
      %s119 = sphi 0, %s118
      %s133 = sphi 0, %s119
      %s139 = sphi 0, %s141
      %s142 = sphi 0, %s139
      %s143 = sphi 0, %s142
      %s159 = sphi 0, %s143
    $region4: #{dyn_conv2d_forward.1} parent=1 // loop_header_branch
      %17 = sbr.rel (%p15) target = $region8
    $region5: #{dyn_conv2d_forward.1} parent=1 // loop_body
      %s19 = ssub.s32 %s14, 1
      %s20 = ssub.s32 %s14, 2
      %s21 = sadd.s32 %s14, 1
      %s22 = ssub.s32 %s14, %s21
      %p23 = scmp.eq.s32.totalorder %s22, 0
      %s25 = sadd.s32 %s24, 1
      %s26 = scalar_select %p23, %s24, %s25
      %p29 = pneg %p23
      %p30 = scmp.eq.s32.totalorder %s14, 1
      %p31 = por %p29, %p30
      %p32 = scmp.ne.s32.totalorder %s24, %s27
      %p33 = scmp.eq.s32.totalorder %s14, 0
      %p34 = por %p32, %p33
      %p35 = scmp.ne.s32.totalorder %s24, %s27
      %p36 = scmp.eq.s32.totalorder %s19, 1
      %p37 = por %p35, %p36
      %p38 = scmp.ne.s32.totalorder %s27, %s28
      %p39 = scmp.eq.s32.totalorder %s19, 0
      %p40 = por %p38, %p39
      %p41 = scmp.ne.s32.totalorder %s27, %s28
      %p42 = scmp.eq.s32.totalorder %s20, 1
      %p43 = por %p41, %p42
      %p45 = scmp.ne.s32.totalorder %s28, %s44
      %p46 = scmp.eq.s32.totalorder %s20, 0
      %p47 = por %p45, %p46
      %s48 = ssub.s32 %s14, %s21
      %p49 = scmp.eq.s32.totalorder %s48, 0
      %s51 = sadd.s32 %s50, 1
      %s52 = scalar_select %p49, %s50, %s51
      %p55 = pneg %p49
      %p56 = scmp.eq.s32.totalorder %s14, 1
      %p57 = por %p55, %p56
      %p58 = scmp.ne.s32.totalorder %s50, %s53
      %p59 = scmp.eq.s32.totalorder %s14, 0
      %p60 = por %p58, %p59
      %p61 = scmp.ne.s32.totalorder %s50, %s53
      %p62 = scmp.eq.s32.totalorder %s19, 1
      %p63 = por %p61, %p62
      %p64 = scmp.ne.s32.totalorder %s53, %s54
      %p65 = scmp.eq.s32.totalorder %s19, 0
      %p66 = por %p64, %p65
      %p67 = scmp.ne.s32.totalorder %s53, %s54
      %p68 = scmp.eq.s32.totalorder %s20, 1
      %p69 = por %p67, %p68
      %p71 = scmp.ne.s32.totalorder %s54, %s70
      %p72 = scmp.eq.s32.totalorder %s20, 0
      %p73 = por %p71, %p72
      %s75 = sadd.s32 %s74, 1
      %p78 = scmp.eq.s32.totalorder %s14, 1
      %p79 = scmp.ne.s32.totalorder %s74, %s76
      %p80 = scmp.eq.s32.totalorder %s14, 0
      %p81 = por %p79, %p80
      %p82 = scmp.ne.s32.totalorder %s74, %s76
      %p83 = scmp.eq.s32.totalorder %s19, 1
      %p84 = por %p82, %p83
      %p85 = scmp.ne.s32.totalorder %s76, %s77
      %p86 = scmp.eq.s32.totalorder %s19, 0
      %p87 = por %p85, %p86
      %p88 = scmp.ne.s32.totalorder %s76, %s77
      %p89 = scmp.eq.s32.totalorder %s20, 1
      %p90 = por %p88, %p89
      %p92 = scmp.ne.s32.totalorder %s77, %s91
      %p93 = scmp.eq.s32.totalorder %s20, 0
      %p94 = por %p92, %p93
      %s96 = sadd.s32 %s95, 1
      %p99 = scmp.eq.s32.totalorder %s14, 1
      %p100 = scmp.ne.s32.totalorder %s95, %s97
      %p101 = scmp.eq.s32.totalorder %s14, 0
      %p102 = por %p100, %p101
      %p103 = scmp.ne.s32.totalorder %s95, %s97
      %p104 = scmp.eq.s32.totalorder %s19, 1
      %p105 = por %p103, %p104
      %p106 = scmp.ne.s32.totalorder %s97, %s98
      %p107 = scmp.eq.s32.totalorder %s19, 0
      %p108 = por %p106, %p107
      %p109 = scmp.ne.s32.totalorder %s97, %s98
      %p110 = scmp.eq.s32.totalorder %s20, 1
      %p111 = por %p109, %p110
      %p113 = scmp.ne.s32.totalorder %s98, %s112
      %p114 = scmp.eq.s32.totalorder %s20, 0
      %p115 = por %p113, %p114
      %s117 = sadd.s32 %s116, 1
      %p120 = scmp.eq.s32.totalorder %s14, 1
      %p121 = scmp.ne.s32.totalorder %s116, %s118
      %p122 = scmp.eq.s32.totalorder %s14, 0
      %p123 = por %p121, %p122
      %p124 = scmp.ne.s32.totalorder %s116, %s118
      %p125 = scmp.eq.s32.totalorder %s19, 1
      %p126 = por %p124, %p125
      %p127 = scmp.ne.s32.totalorder %s118, %s119
      %p128 = scmp.eq.s32.totalorder %s19, 0
      %p129 = por %p127, %p128
      %p130 = scmp.ne.s32.totalorder %s118, %s119
      %p131 = scmp.eq.s32.totalorder %s20, 1
      %p132 = por %p130, %p131
      %p134 = scmp.ne.s32.totalorder %s119, %s133
      %p135 = scmp.eq.s32.totalorder %s20, 0
      %p136 = por %p134, %p135
      %s137 = ssub.s32 %s14, %s21
      %p138 = scmp.eq.s32.totalorder %s137, 0
      %s140 = sadd.s32 %s139, 1
      %s141 = scalar_select %p138, %s139, %s140
      %p144 = pneg %p138
      %p145 = scmp.eq.s32.totalorder %s14, 1
      %p146 = por %p144, %p145
      %p147 = scmp.ne.s32.totalorder %s139, %s142
      %p148 = scmp.eq.s32.totalorder %s14, 0
      %p149 = por %p147, %p148
      %p150 = scmp.ne.s32.totalorder %s139, %s142
      %p151 = scmp.eq.s32.totalorder %s19, 1
      %p152 = por %p150, %p151
      %p153 = scmp.ne.s32.totalorder %s142, %s143
      %p154 = scmp.eq.s32.totalorder %s19, 0
      %p155 = por %p153, %p154
      %p156 = scmp.ne.s32.totalorder %s142, %s143
      %p157 = scmp.eq.s32.totalorder %s20, 1
      %p158 = por %p156, %p157
      %p160 = scmp.ne.s32.totalorder %s143, %s159
      %p161 = scmp.eq.s32.totalorder %s20, 0
      %p162 = por %p160, %p161
      %p163 = scmp.le.s32.totalorder 1, %s14
      %p164 = scmp.lt.s32.totalorder %s14, 3
      %p165 = pnand %p163, %p164
      %p166 = pneg %p165
      // Predicated region
      $region9: #{dyn_conv2d_forward.1} parent=5 // pred_check
        _
      $region10: #{dyn_conv2d_forward.1} parent=5 // pred_check_branch
        %168 = sbr.rel (%p165) target = $region12
      $region11: #{dyn_conv2d_forward.1} parent=5 // pred_region
        %s169 = ssub.s32 %s14, 1
        // Predicated region
        $region13: #{dyn_conv2d_forward.1} parent=11 // pred_check
          %p170 = pneg %p87
        $region14: #{dyn_conv2d_forward.1} parent=11 // pred_check_branch
          %172 = sbr.rel (%p170) target = $region16
        $region15: #{dyn_conv2d_forward.1} parent=11 // pred_region
          _
        $region16: #{dyn_conv2d_forward.1} parent=11 // pred_fallthru
          _
        // Predicated region
        $region17: #{dyn_conv2d_forward.1} parent=11 // pred_check
          %p173 = pneg %p108
        $region18: #{dyn_conv2d_forward.1} parent=11 // pred_check_branch
          %175 = sbr.rel (%p173) target = $region20
        $region19: #{dyn_conv2d_forward.1} parent=11 // pred_region
          _
        $region20: #{dyn_conv2d_forward.1} parent=11 // pred_fallthru
          _
        // Predicated region
        $region21: #{dyn_conv2d_forward.1} parent=11 // pred_check
          %p176 = pneg %p129
        $region22: #{dyn_conv2d_forward.1} parent=11 // pred_check_branch
          %178 = sbr.rel (%p176) target = $region24
        $region23: #{dyn_conv2d_forward.1} parent=11 // pred_region
          _
        $region24: #{dyn_conv2d_forward.1} parent=11 // pred_fallthru
          _
      $region12: #{dyn_conv2d_forward.1} parent=5 // pred_fallthru
        _
      %p179 = scmp.lt.s32.totalorder %s14, 2
      // Predicated region
      $region25: #{dyn_conv2d_forward.1} parent=5 // pred_check
        %p180 = pneg %p179
      $region26: #{dyn_conv2d_forward.1} parent=5 // pred_check_branch
        %182 = sbr.rel (%p180) target = $region28
      $region27: #{dyn_conv2d_forward.1} parent=5 // pred_region
        // Predicated region
        $region29: #{dyn_conv2d_forward.1} parent=27 // pred_check
          %p183 = pneg %p34
        $region30: #{dyn_conv2d_forward.1} parent=27 // pred_check_branch
          %185 = sbr.rel (%p183) target = $region32
        $region31: #{dyn_conv2d_forward.1} parent=27 // pred_region
          %p186 = scmp.lt.s32.totalorder %s14, 1
          %s187 = scalar_select %p186, %s14, 1
          %s188 = smul.addr %s187, 2
          %s189 = scalar_lea.vmem %s0, %s188
        $region32: #{dyn_conv2d_forward.1} parent=27 // pred_fallthru
          _
        // Predicated region
        $region33: #{dyn_conv2d_forward.1} parent=27 // pred_check
          %p190 = pneg %p60
        $region34: #{dyn_conv2d_forward.1} parent=27 // pred_check_branch
          %192 = sbr.rel (%p190) target = $region36
        $region35: #{dyn_conv2d_forward.1} parent=27 // pred_region
          %p193 = scmp.lt.s32.totalorder %s14, 1
          %s194 = scalar_select %p193, %s14, 1
          %s195 = smul.addr %s194, 8
          %s196 = scalar_lea.vmem %s1, %s195
        $region36: #{dyn_conv2d_forward.1} parent=27 // pred_fallthru
          _
      $region28: #{dyn_conv2d_forward.1} parent=5 // pred_fallthru
        _
      %p197 = scmp.le.s32.totalorder 1, %s14
      %p198 = scmp.lt.s32.totalorder %s14, 3
      %p199 = pnand %p197, %p198
      %p200 = pneg %p199
      // Predicated region
      $region37: #{dyn_conv2d_forward.1} parent=5 // pred_check
        _
      $region38: #{dyn_conv2d_forward.1} parent=5 // pred_check_branch
        %202 = sbr.rel (%p199) target = $region40
      $region39: #{dyn_conv2d_forward.1} parent=5 // pred_region
        %s203 = ssub.s32 %s14, 1
        %p204 = scmp.lt.s32.totalorder %s19, 1
        %s205 = scalar_select %p204, %s19, 1
        %s206 = smul.addr %s205, 2
        %s207 = scalar_lea.vmem %s0, %s206
        %p208 = pneg %p40
        %p209 = pneg %p37
        %p210 = scmp.lt.s32.totalorder %s19, 1
        %s211 = scalar_select %p210, %s19, 1
        %s212 = smul.addr %s211, 8
        %s213 = scalar_lea.vmem %s1, %s212
        %p214 = pneg %p66
        %p215 = pneg %p63
        %p216 = pneg %p87
        %p217 = pneg %p84
        %p218 = pneg %p108
        %p219 = pneg %p105
        %p220 = pneg %p129
        %p221 = pneg %p126
        %p222 = pneg %p155
        %p223 = pneg %p152
        %s224 = sand.u32 %s142, 1
        %s225 = scalar_lea.sflag [#allocation3], %s224
        %s226 = sand.u32 %s142, 1
        %s227 = smul.addr %s226, 8
        %s228 = scalar_lea.vmem [#allocation2], %s227
        %p229 = scmp.lt.s32.totalorder %s19, 1
        %s230 = scalar_select %p229, %s19, 1
        %s231 = smul.addr %s230, 2
        %s232 = scalar_lea.vmem %s0, %s231
        %p233 = scmp.lt.s32.totalorder %s19, 1
        %s234 = scalar_select %p233, %s19, 1
        %s235 = smul.addr %s234, 8
        %s236 = scalar_lea.vmem %s1, %s235
        %v238 = vld [vmem:[%s232] sm:$0x3]
        %v239 = vld [vmem:[%s2] sm:$0xf]
        %v240 = vld [vmem:[%s4] sm:$0xff]
        %242 = vset.pattern.permute.xlu0 0
        %243 = vperm.xlu0 %242, %v240
        %v244 = vpop.permute.xlu0 %243
        %vm246 = vcmask 31744
        %v248 = vsel %vm246, %v239, 0
        %vm250 = vcmask 1041408
        %v252 = vsel %vm250, %v238, 0
        %254 = vmatprep.subr.bf16.mxu0 0
        %255 = vmatpush1.bf16.msra.mxu0 %v252
        %256 = vmatprep.subr.bf16.mxu0 0
        %257 = vmatpush1.bf16.msra.mxu0 0
        %258 = vmatprep.subr.bf16.mxu0 0
        %259 = vmatpush1.bf16.msra.mxu0 0
        %260 = vmatprep.subr.bf16.mxu0 0
        %261 = vmatpush1.bf16.msra.mxu0 0
        %262 = vmatprep.subr.bf16.mxu0 0
        %263 = vmatpush1.bf16.msra.mxu0 0
        %264 = vmatprep.subr.bf16.mxu0 0
        %265 = vmatpush1.bf16.msra.mxu0 0
        %266 = vmatprep.subr.bf16.mxu0 0
        %267 = vmatpush1.bf16.msra.mxu0 0
        %268 = vmatprep.subr.bf16.mxu0 0
        %269 = vmatpush1.bf16.msra.mxu0 0
        %270 = vmatprep.subr.bf16.mxu0 0
        %271 = vmatpush1.bf16.msra.mxu0 0
        %272 = vmatprep.subr.bf16.mxu0 0
        %273 = vmatpush1.bf16.msra.mxu0 0
        %274 = vmatprep.subr.bf16.mxu0 0
        %275 = vmatpush1.bf16.msra.mxu0 0
        %276 = vmatprep.subr.bf16.mxu0 0
        %277 = vmatpush1.bf16.msra.mxu0 0
        %278 = vmatprep.subr.bf16.mxu0 0
        %279 = vmatpush1.bf16.msra.mxu0 0
        %280 = vmatprep.subr.bf16.mxu0 0
        %281 = vmatpush1.bf16.msra.mxu0 0
        %282 = vmatprep.subr.bf16.mxu0 0
        %283 = vmatpush1.bf16.msra.mxu0 0
        %284 = vmatprep.subr.bf16.mxu0 0
        %285 = vmatpush1.bf16.msra.mxu0 0
        %286 = vmatprep.mubr.bf16.mxu0 0
        %287 = vmatmul.mubr.bf16.gmra.mrb[0].mxu0 %v248
        %v288 = vpop.f32.mrb[0].mxu0
        %v289 = vadd.f32 %v244, %v288
        %v290 = vpop.f32.mrb[0].mxu0
        %v291 = vpop.f32.mrb[0].mxu0
        %v292 = vpop.f32.mrb[0].mxu0
        %293 = vdwg.mxu0
        %v294 = vld [vmem:[%s3] sm:$0xf]
        %v296 = vsel %vm246, %v294, 0
        %298 = vmatprep.subr.bf16.mxu0 0
        %299 = vmatpush1.bf16.msra.mxu0 %v252
        %300 = vmatprep.subr.bf16.mxu0 0
        %301 = vmatpush1.bf16.msra.mxu0 0
        %302 = vmatprep.subr.bf16.mxu0 0
        %303 = vmatpush1.bf16.msra.mxu0 0
        %304 = vmatprep.subr.bf16.mxu0 0
        %305 = vmatpush1.bf16.msra.mxu0 0
        %306 = vmatprep.subr.bf16.mxu0 0
        %307 = vmatpush1.bf16.msra.mxu0 0
        %308 = vmatprep.subr.bf16.mxu0 0
        %309 = vmatpush1.bf16.msra.mxu0 0
        %310 = vmatprep.subr.bf16.mxu0 0
        %311 = vmatpush1.bf16.msra.mxu0 0
        %312 = vmatprep.subr.bf16.mxu0 0
        %313 = vmatpush1.bf16.msra.mxu0 0
        %314 = vmatprep.subr.bf16.mxu0 0
        %315 = vmatpush1.bf16.msra.mxu0 0
        %316 = vmatprep.subr.bf16.mxu0 0
        %317 = vmatpush1.bf16.msra.mxu0 0
        %318 = vmatprep.subr.bf16.mxu0 0
        %319 = vmatpush1.bf16.msra.mxu0 0
        %320 = vmatprep.subr.bf16.mxu0 0
        %321 = vmatpush1.bf16.msra.mxu0 0
        %322 = vmatprep.subr.bf16.mxu0 0
        %323 = vmatpush1.bf16.msra.mxu0 0
        %324 = vmatprep.subr.bf16.mxu0 0
        %325 = vmatpush1.bf16.msra.mxu0 0
        %326 = vmatprep.subr.bf16.mxu0 0
        %327 = vmatpush1.bf16.msra.mxu0 0
        %328 = vmatprep.subr.bf16.mxu0 0
        %329 = vmatpush1.bf16.msra.mxu0 0
        %330 = vmatprep.mubr.bf16.mxu0 0
        %331 = vmatmul.mubr.bf16.gmra.mrb[0].mxu0 %v296
        %v332 = vpop.f32.mrb[0].mxu0
        %v333 = vadd.f32 0.0, %v332
        %v334 = vpop.f32.mrb[0].mxu0
        %v335 = vpop.f32.mrb[0].mxu0
        %v336 = vpop.f32.mrb[0].mxu0
        %337 = vdwg.mxu0
        %v338 = vlaneseq
        %v339 = vshrl.u32 %v338, 7
        %v340 = vadd.s32 %v339, 8
        %v341 = vadd.s32 %v339, 16
        %v342 = vadd.s32 %v339, 24
        %v343 = vadd.s32 %v339, 32
        %v344 = vadd.s32 %v339, 40
        %v345 = vadd.s32 %v339, 48
        %v346 = vadd.s32 %v339, 56
        %v347 = vadd.s32 %v339, 64
        %v348 = vadd.s32 %v339, 72
        %v349 = vadd.s32 %v339, 80
        %v350 = vadd.s32 %v339, 88
        %v351 = vadd.s32 %v339, 96
        %v352 = vadd.s32 %v339, 104
        %v353 = vadd.s32 %v339, 112
        %v354 = vadd.s32 %v339, 120
        %v355 = vld [vmem:[%s236] sm:$0x1]
        %v356 = vlaneseq
        %v357 = vshrl.u32 %v356, 7
        %v358 = vsub.s32 0, %v357
        %v359 = vrot.slane %v355, %v358
        %vm360 = vcmp.eq.s32.totalorder %v339, %v359
        %vm361 = vcmp.eq.s32.totalorder %v340, %v359
        %vm362 = vcmp.eq.s32.totalorder %v341, %v359
        %vm363 = vcmp.eq.s32.totalorder %v342, %v359
        %vm364 = vcmp.eq.s32.totalorder %v343, %v359
        %vm365 = vcmp.eq.s32.totalorder %v344, %v359
        %vm366 = vcmp.eq.s32.totalorder %v345, %v359
        %vm367 = vcmp.eq.s32.totalorder %v346, %v359
        %vm368 = vcmp.eq.s32.totalorder %v347, %v359
        %vm369 = vcmp.eq.s32.totalorder %v348, %v359
        %vm370 = vcmp.eq.s32.totalorder %v349, %v359
        %vm371 = vcmp.eq.s32.totalorder %v350, %v359
        %vm372 = vcmp.eq.s32.totalorder %v351, %v359
        %vm373 = vcmp.eq.s32.totalorder %v352, %v359
        %vm374 = vcmp.eq.s32.totalorder %v353, %v359
        %vm375 = vcmp.eq.s32.totalorder %v354, %v359
        %v376 = vsel %vm360, 1, 0
        %v377 = vsel %vm361, 1, 0
        %v378 = vsel %vm362, 1, 0
        %v379 = vsel %vm363, 1, 0
        %v380 = vsel %vm364, 1, 0
        %v381 = vsel %vm365, 1, 0
        %v382 = vsel %vm366, 1, 0
        %v383 = vsel %vm367, 1, 0
        %v384 = vsel %vm368, 1, 0
        %v385 = vsel %vm369, 1, 0
        %v386 = vsel %vm370, 1, 0
        %v387 = vsel %vm371, 1, 0
        %v388 = vsel %vm372, 1, 0
        %v389 = vsel %vm373, 1, 0
        %v390 = vsel %vm374, 1, 0
        %v391 = vsel %vm375, 1, 0
        %v392 = vcvt.s32.f32 %v376
        %v393 = vcvt.s32.f32 %v377
        %v394 = vcvt.s32.f32 %v378
        %v395 = vcvt.s32.f32 %v379
        %v396 = vcvt.s32.f32 %v380
        %v397 = vcvt.s32.f32 %v381
        %v398 = vcvt.s32.f32 %v382
        %v399 = vcvt.s32.f32 %v383
        %v400 = vcvt.s32.f32 %v384
        %v401 = vcvt.s32.f32 %v385
        %v402 = vcvt.s32.f32 %v386
        %v403 = vcvt.s32.f32 %v387
        %v404 = vcvt.s32.f32 %v388
        %v405 = vcvt.s32.f32 %v389
        %v406 = vcvt.s32.f32 %v390
        %v407 = vcvt.s32.f32 %v391
        %408 = vmatprep.subr.mxu0 0.0
        %409 = vmatpush1.msra.mxu0 %v392
        %410 = vmatprep.subr.mxu0 0.0
        %411 = vmatpush1.msra.mxu0 %v393
        %412 = vmatprep.subr.mxu0 0.0
        %413 = vmatpush1.msra.mxu0 %v394
        %414 = vmatprep.subr.mxu0 0.0
        %415 = vmatpush1.msra.mxu0 %v395
        %416 = vmatprep.subr.mxu0 0.0
        %417 = vmatpush1.msra.mxu0 %v396
        %418 = vmatprep.subr.mxu0 0.0
        %419 = vmatpush1.msra.mxu0 %v397
        %420 = vmatprep.subr.mxu0 0.0
        %421 = vmatpush1.msra.mxu0 %v398
        %422 = vmatprep.subr.mxu0 0.0
        %423 = vmatpush1.msra.mxu0 %v399
        %424 = vmatprep.subr.mxu0 0.0
        %425 = vmatpush1.msra.mxu0 %v400
        %426 = vmatprep.subr.mxu0 0.0
        %427 = vmatpush1.msra.mxu0 %v401
        %428 = vmatprep.subr.mxu0 0.0
        %429 = vmatpush1.msra.mxu0 %v402
        %430 = vmatprep.subr.mxu0 0.0
        %431 = vmatpush1.msra.mxu0 %v403
        %432 = vmatprep.subr.mxu0 0.0
        %433 = vmatpush1.msra.mxu0 %v404
        %434 = vmatprep.subr.mxu0 0.0
        %435 = vmatpush1.msra.mxu0 %v405
        %436 = vmatprep.subr.mxu0 0.0
        %437 = vmatpush1.msra.mxu0 %v406
        %438 = vmatprep.subr.mxu0 0.0
        %439 = vmatpush1.msra.mxu0 %v407
        %440 = vmatprep.subr.mxu0 0.0
        %441 = vmatpush1.msra.mxu0 0.0
        %442 = vmatprep.subr.mxu0 0.0
        %443 = vmatpush1.msra.mxu0 0.0
        %444 = vmatprep.subr.mxu0 0.0
        %445 = vmatpush1.msra.mxu0 0.0
        %446 = vmatprep.subr.mxu0 0.0
        %447 = vmatpush1.msra.mxu0 0.0
        %448 = vmatprep.subr.mxu0 0.0
        %449 = vmatpush1.msra.mxu0 0.0
        %450 = vmatprep.subr.mxu0 0.0
        %451 = vmatpush1.msra.mxu0 0.0
        %452 = vmatprep.subr.mxu0 0.0
        %453 = vmatpush1.msra.mxu0 0.0
        %454 = vmatprep.subr.mxu0 0.0
        %455 = vmatpush1.msra.mxu0 0.0
        %456 = vmatprep.subr.mxu0 0.0
        %457 = vmatpush1.msra.mxu0 0.0
        %458 = vmatprep.subr.mxu0 0.0
        %459 = vmatpush1.msra.mxu0 0.0
        %460 = vmatprep.subr.mxu0 0.0
        %461 = vmatpush1.msra.mxu0 0.0
        %462 = vmatprep.subr.mxu0 0.0
        %463 = vmatpush1.msra.mxu0 0.0
        %464 = vmatprep.subr.mxu0 0.0
        %465 = vmatpush1.msra.mxu0 0.0
        %466 = vmatprep.subr.mxu0 0.0
        %467 = vmatpush1.msra.mxu0 0.0
        %468 = vmatprep.subr.mxu0 0.0
        %469 = vmatpush1.msra.mxu0 0.0
        %470 = vmatprep.subr.mxu0 0.0
        %471 = vmatpush1.msra.mxu0 0.0
        %472 = vmatprep.mubr.f32.mxu0 0.0
        %473 = vmatmul.mubr.f32.gmra.mrb[0].mxu0 %v333
        %v474 = vpop.f32.mrb[0].mxu0
        %v475 = vadd.f32 0.0, %v474
        %v476 = vpop.f32.mrb[0].mxu0
        %477 = vdwg.mxu0
        %v478 = vld [vmem:[%s236 + $0x1] sm:$0x1]
        %v479 = vlaneseq
        %v480 = vshrl.u32 %v479, 7
        %v481 = vsub.s32 0, %v480
        %v482 = vrot.slane %v478, %v481
        %vm483 = vcmp.eq.s32.totalorder %v339, %v482
        %vm484 = vcmp.eq.s32.totalorder %v340, %v482
        %vm485 = vcmp.eq.s32.totalorder %v341, %v482
        %vm486 = vcmp.eq.s32.totalorder %v342, %v482
        %vm487 = vcmp.eq.s32.totalorder %v343, %v482
        %vm488 = vcmp.eq.s32.totalorder %v344, %v482
        %vm489 = vcmp.eq.s32.totalorder %v345, %v482
        %vm490 = vcmp.eq.s32.totalorder %v346, %v482
        %vm491 = vcmp.eq.s32.totalorder %v347, %v482
        %vm492 = vcmp.eq.s32.totalorder %v348, %v482
        %vm493 = vcmp.eq.s32.totalorder %v349, %v482
        %vm494 = vcmp.eq.s32.totalorder %v350, %v482
        %vm495 = vcmp.eq.s32.totalorder %v351, %v482
        %vm496 = vcmp.eq.s32.totalorder %v352, %v482
        %vm497 = vcmp.eq.s32.totalorder %v353, %v482
        %vm498 = vcmp.eq.s32.totalorder %v354, %v482
        %v499 = vsel %vm483, 1, 0
        %v500 = vsel %vm484, 1, 0
        %v501 = vsel %vm485, 1, 0
        %v502 = vsel %vm486, 1, 0
        %v503 = vsel %vm487, 1, 0
        %v504 = vsel %vm488, 1, 0
        %v505 = vsel %vm489, 1, 0
        %v506 = vsel %vm490, 1, 0
        %v507 = vsel %vm491, 1, 0
        %v508 = vsel %vm492, 1, 0
        %v509 = vsel %vm493, 1, 0
        %v510 = vsel %vm494, 1, 0
        %v511 = vsel %vm495, 1, 0
        %v512 = vsel %vm496, 1, 0
        %v513 = vsel %vm497, 1, 0
        %v514 = vsel %vm498, 1, 0
        %v515 = vcvt.s32.f32 %v499
        %v516 = vcvt.s32.f32 %v500
        %v517 = vcvt.s32.f32 %v501
        %v518 = vcvt.s32.f32 %v502
        %v519 = vcvt.s32.f32 %v503
        %v520 = vcvt.s32.f32 %v504
        %v521 = vcvt.s32.f32 %v505
        %v522 = vcvt.s32.f32 %v506
        %v523 = vcvt.s32.f32 %v507
        %v524 = vcvt.s32.f32 %v508
        %v525 = vcvt.s32.f32 %v509
        %v526 = vcvt.s32.f32 %v510
        %v527 = vcvt.s32.f32 %v511
        %v528 = vcvt.s32.f32 %v512
        %v529 = vcvt.s32.f32 %v513
        %v530 = vcvt.s32.f32 %v514
        %531 = vmatprep.subr.mxu0 0.0
        %532 = vmatpush1.msra.mxu0 %v515
        %533 = vmatprep.subr.mxu0 0.0
        %534 = vmatpush1.msra.mxu0 %v516
        %535 = vmatprep.subr.mxu0 0.0
        %536 = vmatpush1.msra.mxu0 %v517
        %537 = vmatprep.subr.mxu0 0.0
        %538 = vmatpush1.msra.mxu0 %v518
        %539 = vmatprep.subr.mxu0 0.0
        %540 = vmatpush1.msra.mxu0 %v519
        %541 = vmatprep.subr.mxu0 0.0
        %542 = vmatpush1.msra.mxu0 %v520
        %543 = vmatprep.subr.mxu0 0.0
        %544 = vmatpush1.msra.mxu0 %v521
        %545 = vmatprep.subr.mxu0 0.0
        %546 = vmatpush1.msra.mxu0 %v522
        %547 = vmatprep.subr.mxu0 0.0
        %548 = vmatpush1.msra.mxu0 %v523
        %549 = vmatprep.subr.mxu0 0.0
        %550 = vmatpush1.msra.mxu0 %v524
        %551 = vmatprep.subr.mxu0 0.0
        %552 = vmatpush1.msra.mxu0 %v525
        %553 = vmatprep.subr.mxu0 0.0
        %554 = vmatpush1.msra.mxu0 %v526
        %555 = vmatprep.subr.mxu0 0.0
        %556 = vmatpush1.msra.mxu0 %v527
        %557 = vmatprep.subr.mxu0 0.0
        %558 = vmatpush1.msra.mxu0 %v528
        %559 = vmatprep.subr.mxu0 0.0
        %560 = vmatpush1.msra.mxu0 %v529
        %561 = vmatprep.subr.mxu0 0.0
        %562 = vmatpush1.msra.mxu0 %v530
        %563 = vmatprep.subr.mxu0 0.0
        %564 = vmatpush1.msra.mxu0 0.0
        %565 = vmatprep.subr.mxu0 0.0
        %566 = vmatpush1.msra.mxu0 0.0
        %567 = vmatprep.subr.mxu0 0.0
        %568 = vmatpush1.msra.mxu0 0.0
        %569 = vmatprep.subr.mxu0 0.0
        %570 = vmatpush1.msra.mxu0 0.0
        %571 = vmatprep.subr.mxu0 0.0
        %572 = vmatpush1.msra.mxu0 0.0
        %573 = vmatprep.subr.mxu0 0.0
        %574 = vmatpush1.msra.mxu0 0.0
        %575 = vmatprep.subr.mxu0 0.0
        %576 = vmatpush1.msra.mxu0 0.0
        %577 = vmatprep.subr.mxu0 0.0
        %578 = vmatpush1.msra.mxu0 0.0
        %579 = vmatprep.subr.mxu0 0.0
        %580 = vmatpush1.msra.mxu0 0.0
        %581 = vmatprep.subr.mxu0 0.0
        %582 = vmatpush1.msra.mxu0 0.0
        %583 = vmatprep.subr.mxu0 0.0
        %584 = vmatpush1.msra.mxu0 0.0
        %585 = vmatprep.subr.mxu0 0.0
        %586 = vmatpush1.msra.mxu0 0.0
        %587 = vmatprep.subr.mxu0 0.0
        %588 = vmatpush1.msra.mxu0 0.0
        %589 = vmatprep.subr.mxu0 0.0
        %590 = vmatpush1.msra.mxu0 0.0
        %591 = vmatprep.subr.mxu0 0.0
        %592 = vmatpush1.msra.mxu0 0.0
        %593 = vmatprep.subr.mxu0 0.0
        %594 = vmatpush1.msra.mxu0 0.0
        %595 = vmatprep.mubr.f32.mxu0 0.0
        %596 = vmatmul.mubr.f32.gmra.mrb[0].mxu0 %v333
        %v597 = vpop.f32.mrb[0].mxu0
        %v598 = vadd.f32 0.0, %v597
        %v599 = vpop.f32.mrb[0].mxu0
        %600 = vdwg.mxu0
        %v601 = vmax.f32 %v475, %v598
        %v602 = vld [vmem:[%s236 + $0x2] sm:$0x1]
        %v603 = vlaneseq
        %v604 = vshrl.u32 %v603, 7
        %v605 = vsub.s32 0, %v604
        %v606 = vrot.slane %v602, %v605
        %vm607 = vcmp.eq.s32.totalorder %v339, %v606
        %vm608 = vcmp.eq.s32.totalorder %v340, %v606
        %vm609 = vcmp.eq.s32.totalorder %v341, %v606
        %vm610 = vcmp.eq.s32.totalorder %v342, %v606
        %vm611 = vcmp.eq.s32.totalorder %v343, %v606
        %vm612 = vcmp.eq.s32.totalorder %v344, %v606
        %vm613 = vcmp.eq.s32.totalorder %v345, %v606
        %vm614 = vcmp.eq.s32.totalorder %v346, %v606
        %vm615 = vcmp.eq.s32.totalorder %v347, %v606
        %vm616 = vcmp.eq.s32.totalorder %v348, %v606
        %vm617 = vcmp.eq.s32.totalorder %v349, %v606
        %vm618 = vcmp.eq.s32.totalorder %v350, %v606
        %vm619 = vcmp.eq.s32.totalorder %v351, %v606
        %vm620 = vcmp.eq.s32.totalorder %v352, %v606
        %vm621 = vcmp.eq.s32.totalorder %v353, %v606
        %vm622 = vcmp.eq.s32.totalorder %v354, %v606
        %v623 = vsel %vm607, 1, 0
        %v624 = vsel %vm608, 1, 0
        %v625 = vsel %vm609, 1, 0
        %v626 = vsel %vm610, 1, 0
        %v627 = vsel %vm611, 1, 0
        %v628 = vsel %vm612, 1, 0
        %v629 = vsel %vm613, 1, 0
        %v630 = vsel %vm614, 1, 0
        %v631 = vsel %vm615, 1, 0
        %v632 = vsel %vm616, 1, 0
        %v633 = vsel %vm617, 1, 0
        %v634 = vsel %vm618, 1, 0
        %v635 = vsel %vm619, 1, 0
        %v636 = vsel %vm620, 1, 0
        %v637 = vsel %vm621, 1, 0
        %v638 = vsel %vm622, 1, 0
        %v639 = vcvt.s32.f32 %v623
        %v640 = vcvt.s32.f32 %v624
        %v641 = vcvt.s32.f32 %v625
        %v642 = vcvt.s32.f32 %v626
        %v643 = vcvt.s32.f32 %v627
        %v644 = vcvt.s32.f32 %v628
        %v645 = vcvt.s32.f32 %v629
        %v646 = vcvt.s32.f32 %v630
        %v647 = vcvt.s32.f32 %v631
        %v648 = vcvt.s32.f32 %v632
        %v649 = vcvt.s32.f32 %v633
        %v650 = vcvt.s32.f32 %v634
        %v651 = vcvt.s32.f32 %v635
        %v652 = vcvt.s32.f32 %v636
        %v653 = vcvt.s32.f32 %v637
        %v654 = vcvt.s32.f32 %v638
        %655 = vmatprep.subr.mxu0 0.0
        %656 = vmatpush1.msra.mxu0 %v639
        %657 = vmatprep.subr.mxu0 0.0
        %658 = vmatpush1.msra.mxu0 %v640
        %659 = vmatprep.subr.mxu0 0.0
        %660 = vmatpush1.msra.mxu0 %v641
        %661 = vmatprep.subr.mxu0 0.0
        %662 = vmatpush1.msra.mxu0 %v642
        %663 = vmatprep.subr.mxu0 0.0
        %664 = vmatpush1.msra.mxu0 %v643
        %665 = vmatprep.subr.mxu0 0.0
        %666 = vmatpush1.msra.mxu0 %v644
        %667 = vmatprep.subr.mxu0 0.0
        %668 = vmatpush1.msra.mxu0 %v645
        %669 = vmatprep.subr.mxu0 0.0
        %670 = vmatpush1.msra.mxu0 %v646
        %671 = vmatprep.subr.mxu0 0.0
        %672 = vmatpush1.msra.mxu0 %v647
        %673 = vmatprep.subr.mxu0 0.0
        %674 = vmatpush1.msra.mxu0 %v648
        %675 = vmatprep.subr.mxu0 0.0
        %676 = vmatpush1.msra.mxu0 %v649
        %677 = vmatprep.subr.mxu0 0.0
        %678 = vmatpush1.msra.mxu0 %v650
        %679 = vmatprep.subr.mxu0 0.0
        %680 = vmatpush1.msra.mxu0 %v651
        %681 = vmatprep.subr.mxu0 0.0
        %682 = vmatpush1.msra.mxu0 %v652
        %683 = vmatprep.subr.mxu0 0.0
        %684 = vmatpush1.msra.mxu0 %v653
        %685 = vmatprep.subr.mxu0 0.0
        %686 = vmatpush1.msra.mxu0 %v654
        %687 = vmatprep.subr.mxu0 0.0
        %688 = vmatpush1.msra.mxu0 0.0
        %689 = vmatprep.subr.mxu0 0.0
        %690 = vmatpush1.msra.mxu0 0.0
        %691 = vmatprep.subr.mxu0 0.0
        %692 = vmatpush1.msra.mxu0 0.0
        %693 = vmatprep.subr.mxu0 0.0
        %694 = vmatpush1.msra.mxu0 0.0
        %695 = vmatprep.subr.mxu0 0.0
        %696 = vmatpush1.msra.mxu0 0.0
        %697 = vmatprep.subr.mxu0 0.0
        %698 = vmatpush1.msra.mxu0 0.0
        %699 = vmatprep.subr.mxu0 0.0
        %700 = vmatpush1.msra.mxu0 0.0
        %701 = vmatprep.subr.mxu0 0.0
        %702 = vmatpush1.msra.mxu0 0.0
        %703 = vmatprep.subr.mxu0 0.0
        %704 = vmatpush1.msra.mxu0 0.0
        %705 = vmatprep.subr.mxu0 0.0
        %706 = vmatpush1.msra.mxu0 0.0
        %707 = vmatprep.subr.mxu0 0.0
        %708 = vmatpush1.msra.mxu0 0.0
        %709 = vmatprep.subr.mxu0 0.0
        %710 = vmatpush1.msra.mxu0 0.0
        %711 = vmatprep.subr.mxu0 0.0
        %712 = vmatpush1.msra.mxu0 0.0
        %713 = vmatprep.subr.mxu0 0.0
        %714 = vmatpush1.msra.mxu0 0.0
        %715 = vmatprep.subr.mxu0 0.0
        %716 = vmatpush1.msra.mxu0 0.0
        %717 = vmatprep.subr.mxu0 0.0
        %718 = vmatpush1.msra.mxu0 0.0
        %719 = vmatprep.mubr.f32.mxu0 0.0
        %720 = vmatmul.mubr.f32.gmra.mrb[0].mxu0 %v333
        %v721 = vpop.f32.mrb[0].mxu0
        %v722 = vadd.f32 0.0, %v721
        %v723 = vpop.f32.mrb[0].mxu0
        %724 = vdwg.mxu0
        %v725 = vmax.f32 %v601, %v722
        %v726 = vld [vmem:[%s236 + $0x3] sm:$0x1]
        %v727 = vlaneseq
        %v728 = vshrl.u32 %v727, 7
        %v729 = vsub.s32 0, %v728
        %v730 = vrot.slane %v726, %v729
        %vm731 = vcmp.eq.s32.totalorder %v339, %v730
        %vm732 = vcmp.eq.s32.totalorder %v340, %v730
        %vm733 = vcmp.eq.s32.totalorder %v341, %v730
        %vm734 = vcmp.eq.s32.totalorder %v342, %v730
        %vm735 = vcmp.eq.s32.totalorder %v343, %v730
        %vm736 = vcmp.eq.s32.totalorder %v344, %v730
        %vm737 = vcmp.eq.s32.totalorder %v345, %v730
        %vm738 = vcmp.eq.s32.totalorder %v346, %v730
        %vm739 = vcmp.eq.s32.totalorder %v347, %v730
        %vm740 = vcmp.eq.s32.totalorder %v348, %v730
        %vm741 = vcmp.eq.s32.totalorder %v349, %v730
        %vm742 = vcmp.eq.s32.totalorder %v350, %v730
        %vm743 = vcmp.eq.s32.totalorder %v351, %v730
        %vm744 = vcmp.eq.s32.totalorder %v352, %v730
        %vm745 = vcmp.eq.s32.totalorder %v353, %v730
        %vm746 = vcmp.eq.s32.totalorder %v354, %v730
        %v747 = vsel %vm731, 1, 0
        %v748 = vsel %vm732, 1, 0
        %v749 = vsel %vm733, 1, 0
        %v750 = vsel %vm734, 1, 0
        %v751 = vsel %vm735, 1, 0
        %v752 = vsel %vm736, 1, 0
        %v753 = vsel %vm737, 1, 0
        %v754 = vsel %vm738, 1, 0
        %v755 = vsel %vm739, 1, 0
        %v756 = vsel %vm740, 1, 0
        %v757 = vsel %vm741, 1, 0
        %v758 = vsel %vm742, 1, 0
        %v759 = vsel %vm743, 1, 0
        %v760 = vsel %vm744, 1, 0
        %v761 = vsel %vm745, 1, 0
        %v762 = vsel %vm746, 1, 0
        %v763 = vcvt.s32.f32 %v747
        %v764 = vcvt.s32.f32 %v748
        %v765 = vcvt.s32.f32 %v749
        %v766 = vcvt.s32.f32 %v750
        %v767 = vcvt.s32.f32 %v751
        %v768 = vcvt.s32.f32 %v752
        %v769 = vcvt.s32.f32 %v753
        %v770 = vcvt.s32.f32 %v754
        %v771 = vcvt.s32.f32 %v755
        %v772 = vcvt.s32.f32 %v756
        %v773 = vcvt.s32.f32 %v757
        %v774 = vcvt.s32.f32 %v758
        %v775 = vcvt.s32.f32 %v759
        %v776 = vcvt.s32.f32 %v760
        %v777 = vcvt.s32.f32 %v761
        %v778 = vcvt.s32.f32 %v762
        %779 = vmatprep.subr.mxu0 0.0
        %780 = vmatpush1.msra.mxu0 %v763
        %781 = vmatprep.subr.mxu0 0.0
        %782 = vmatpush1.msra.mxu0 %v764
        %783 = vmatprep.subr.mxu0 0.0
        %784 = vmatpush1.msra.mxu0 %v765
        %785 = vmatprep.subr.mxu0 0.0
        %786 = vmatpush1.msra.mxu0 %v766
        %787 = vmatprep.subr.mxu0 0.0
        %788 = vmatpush1.msra.mxu0 %v767
        %789 = vmatprep.subr.mxu0 0.0
        %790 = vmatpush1.msra.mxu0 %v768
        %791 = vmatprep.subr.mxu0 0.0
        %792 = vmatpush1.msra.mxu0 %v769
        %793 = vmatprep.subr.mxu0 0.0
        %794 = vmatpush1.msra.mxu0 %v770
        %795 = vmatprep.subr.mxu0 0.0
        %796 = vmatpush1.msra.mxu0 %v771
        %797 = vmatprep.subr.mxu0 0.0
        %798 = vmatpush1.msra.mxu0 %v772
        %799 = vmatprep.subr.mxu0 0.0
        %800 = vmatpush1.msra.mxu0 %v773
        %801 = vmatprep.subr.mxu0 0.0
        %802 = vmatpush1.msra.mxu0 %v774
        %803 = vmatprep.subr.mxu0 0.0
        %804 = vmatpush1.msra.mxu0 %v775
        %805 = vmatprep.subr.mxu0 0.0
        %806 = vmatpush1.msra.mxu0 %v776
        %807 = vmatprep.subr.mxu0 0.0
        %808 = vmatpush1.msra.mxu0 %v777
        %809 = vmatprep.subr.mxu0 0.0
        %810 = vmatpush1.msra.mxu0 %v778
        %811 = vmatprep.subr.mxu0 0.0
        %812 = vmatpush1.msra.mxu0 0.0
        %813 = vmatprep.subr.mxu0 0.0
        %814 = vmatpush1.msra.mxu0 0.0
        %815 = vmatprep.subr.mxu0 0.0
        %816 = vmatpush1.msra.mxu0 0.0
        %817 = vmatprep.subr.mxu0 0.0
        %818 = vmatpush1.msra.mxu0 0.0
        %819 = vmatprep.subr.mxu0 0.0
        %820 = vmatpush1.msra.mxu0 0.0
        %821 = vmatprep.subr.mxu0 0.0
        %822 = vmatpush1.msra.mxu0 0.0
        %823 = vmatprep.subr.mxu0 0.0
        %824 = vmatpush1.msra.mxu0 0.0
        %825 = vmatprep.subr.mxu0 0.0
        %826 = vmatpush1.msra.mxu0 0.0
        %827 = vmatprep.subr.mxu0 0.0
        %828 = vmatpush1.msra.mxu0 0.0
        %829 = vmatprep.subr.mxu0 0.0
        %830 = vmatpush1.msra.mxu0 0.0
        %831 = vmatprep.subr.mxu0 0.0
        %832 = vmatpush1.msra.mxu0 0.0
        %833 = vmatprep.subr.mxu0 0.0
        %834 = vmatpush1.msra.mxu0 0.0
        %835 = vmatprep.subr.mxu0 0.0
        %836 = vmatpush1.msra.mxu0 0.0
        %837 = vmatprep.subr.mxu0 0.0
        %838 = vmatpush1.msra.mxu0 0.0
        %839 = vmatprep.subr.mxu0 0.0
        %840 = vmatpush1.msra.mxu0 0.0
        %841 = vmatprep.subr.mxu0 0.0
        %842 = vmatpush1.msra.mxu0 0.0
        %843 = vmatprep.mubr.f32.mxu0 0.0
        %844 = vmatmul.mubr.f32.gmra.mrb[0].mxu0 %v333
        %v845 = vpop.f32.mrb[0].mxu0
        %v846 = vadd.f32 0.0, %v845
        %v847 = vpop.f32.mrb[0].mxu0
        %848 = vdwg.mxu0
        %v849 = vmax.f32 %v725, %v846
        %v850 = vld [vmem:[%s236 + $0x4] sm:$0x1]
        %v851 = vlaneseq
        %v852 = vshrl.u32 %v851, 7
        %v853 = vsub.s32 0, %v852
        %v854 = vrot.slane %v850, %v853
        %vm855 = vcmp.eq.s32.totalorder %v339, %v854
        %vm856 = vcmp.eq.s32.totalorder %v340, %v854
        %vm857 = vcmp.eq.s32.totalorder %v341, %v854
        %vm858 = vcmp.eq.s32.totalorder %v342, %v854
        %vm859 = vcmp.eq.s32.totalorder %v343, %v854
        %vm860 = vcmp.eq.s32.totalorder %v344, %v854
        %vm861 = vcmp.eq.s32.totalorder %v345, %v854
        %vm862 = vcmp.eq.s32.totalorder %v346, %v854
        %vm863 = vcmp.eq.s32.totalorder %v347, %v854
        %vm864 = vcmp.eq.s32.totalorder %v348, %v854
        %vm865 = vcmp.eq.s32.totalorder %v349, %v854
        %vm866 = vcmp.eq.s32.totalorder %v350, %v854
        %vm867 = vcmp.eq.s32.totalorder %v351, %v854
        %vm868 = vcmp.eq.s32.totalorder %v352, %v854
        %vm869 = vcmp.eq.s32.totalorder %v353, %v854
        %vm870 = vcmp.eq.s32.totalorder %v354, %v854
        %v871 = vsel %vm855, 1, 0
        %v872 = vsel %vm856, 1, 0
        %v873 = vsel %vm857, 1, 0
        %v874 = vsel %vm858, 1, 0
        %v875 = vsel %vm859, 1, 0
        %v876 = vsel %vm860, 1, 0
        %v877 = vsel %vm861, 1, 0
        %v878 = vsel %vm862, 1, 0
        %v879 = vsel %vm863, 1, 0
        %v880 = vsel %vm864, 1, 0
        %v881 = vsel %vm865, 1, 0
        %v882 = vsel %vm866, 1, 0
        %v883 = vsel %vm867, 1, 0
        %v884 = vsel %vm868, 1, 0
        %v885 = vsel %vm869, 1, 0
        %v886 = vsel %vm870, 1, 0
        %v887 = vcvt.s32.f32 %v871
        %v888 = vcvt.s32.f32 %v872
        %v889 = vcvt.s32.f32 %v873
        %v890 = vcvt.s32.f32 %v874
        %v891 = vcvt.s32.f32 %v875
        %v892 = vcvt.s32.f32 %v876
        %v893 = vcvt.s32.f32 %v877
        %v894 = vcvt.s32.f32 %v878
        %v895 = vcvt.s32.f32 %v879
        %v896 = vcvt.s32.f32 %v880
        %v897 = vcvt.s32.f32 %v881
        %v898 = vcvt.s32.f32 %v882
        %v899 = vcvt.s32.f32 %v883
        %v900 = vcvt.s32.f32 %v884
        %v901 = vcvt.s32.f32 %v885
        %v902 = vcvt.s32.f32 %v886
        %903 = vmatprep.subr.mxu0 0.0
        %904 = vmatpush1.msra.mxu0 %v887
        %905 = vmatprep.subr.mxu0 0.0
        %906 = vmatpush1.msra.mxu0 %v888
        %907 = vmatprep.subr.mxu0 0.0
        %908 = vmatpush1.msra.mxu0 %v889
        %909 = vmatprep.subr.mxu0 0.0
        %910 = vmatpush1.msra.mxu0 %v890
        %911 = vmatprep.subr.mxu0 0.0
        %912 = vmatpush1.msra.mxu0 %v891
        %913 = vmatprep.subr.mxu0 0.0
        %914 = vmatpush1.msra.mxu0 %v892
        %915 = vmatprep.subr.mxu0 0.0
        %916 = vmatpush1.msra.mxu0 %v893
        %917 = vmatprep.subr.mxu0 0.0
        %918 = vmatpush1.msra.mxu0 %v894
        %919 = vmatprep.subr.mxu0 0.0
        %920 = vmatpush1.msra.mxu0 %v895
        %921 = vmatprep.subr.mxu0 0.0
        %922 = vmatpush1.msra.mxu0 %v896
        %923 = vmatprep.subr.mxu0 0.0
        %924 = vmatpush1.msra.mxu0 %v897
        %925 = vmatprep.subr.mxu0 0.0
        %926 = vmatpush1.msra.mxu0 %v898
        %927 = vmatprep.subr.mxu0 0.0
        %928 = vmatpush1.msra.mxu0 %v899
        %929 = vmatprep.subr.mxu0 0.0
        %930 = vmatpush1.msra.mxu0 %v900
        %931 = vmatprep.subr.mxu0 0.0
        %932 = vmatpush1.msra.mxu0 %v901
        %933 = vmatprep.subr.mxu0 0.0
        %934 = vmatpush1.msra.mxu0 %v902
        %935 = vmatprep.subr.mxu0 0.0
        %936 = vmatpush1.msra.mxu0 0.0
        %937 = vmatprep.subr.mxu0 0.0
        %938 = vmatpush1.msra.mxu0 0.0
        %939 = vmatprep.subr.mxu0 0.0
        %940 = vmatpush1.msra.mxu0 0.0
        %941 = vmatprep.subr.mxu0 0.0
        %942 = vmatpush1.msra.mxu0 0.0
        %943 = vmatprep.subr.mxu0 0.0
        %944 = vmatpush1.msra.mxu0 0.0
        %945 = vmatprep.subr.mxu0 0.0
        %946 = vmatpush1.msra.mxu0 0.0
        %947 = vmatprep.subr.mxu0 0.0
        %948 = vmatpush1.msra.mxu0 0.0
        %949 = vmatprep.subr.mxu0 0.0
        %950 = vmatpush1.msra.mxu0 0.0
        %951 = vmatprep.subr.mxu0 0.0
        %952 = vmatpush1.msra.mxu0 0.0
        %953 = vmatprep.subr.mxu0 0.0
        %954 = vmatpush1.msra.mxu0 0.0
        %955 = vmatprep.subr.mxu0 0.0
        %956 = vmatpush1.msra.mxu0 0.0
        %957 = vmatprep.subr.mxu0 0.0
        %958 = vmatpush1.msra.mxu0 0.0
        %959 = vmatprep.subr.mxu0 0.0
        %960 = vmatpush1.msra.mxu0 0.0
        %961 = vmatprep.subr.mxu0 0.0
        %962 = vmatpush1.msra.mxu0 0.0
        %963 = vmatprep.subr.mxu0 0.0
        %964 = vmatpush1.msra.mxu0 0.0
        %965 = vmatprep.subr.mxu0 0.0
        %966 = vmatpush1.msra.mxu0 0.0
        %967 = vmatprep.mubr.f32.mxu0 0.0
        %968 = vmatmul.mubr.f32.gmra.mrb[0].mxu0 %v333
        %v969 = vpop.f32.mrb[0].mxu0
        %v970 = vadd.f32 0.0, %v969
        %v971 = vpop.f32.mrb[0].mxu0
        %972 = vdwg.mxu0
        %v973 = vmax.f32 %v849, %v970
        %v974 = vld [vmem:[%s236 + $0x5] sm:$0x1]
        %v975 = vlaneseq
        %v976 = vshrl.u32 %v975, 7
        %v977 = vsub.s32 0, %v976
        %v978 = vrot.slane %v974, %v977
        %vm979 = vcmp.eq.s32.totalorder %v339, %v978
        %vm980 = vcmp.eq.s32.totalorder %v340, %v978
        %vm981 = vcmp.eq.s32.totalorder %v341, %v978
        %vm982 = vcmp.eq.s32.totalorder %v342, %v978
        %vm983 = vcmp.eq.s32.totalorder %v343, %v978
        %vm984 = vcmp.eq.s32.totalorder %v344, %v978
        %vm985 = vcmp.eq.s32.totalorder %v345, %v978
        %vm986 = vcmp.eq.s32.totalorder %v346, %v978
        %vm987 = vcmp.eq.s32.totalorder %v347, %v978
        %vm988 = vcmp.eq.s32.totalorder %v348, %v978
        %vm989 = vcmp.eq.s32.totalorder %v349, %v978
        %vm990 = vcmp.eq.s32.totalorder %v350, %v978
        %vm991 = vcmp.eq.s32.totalorder %v351, %v978
        %vm992 = vcmp.eq.s32.totalorder %v352, %v978
        %vm993 = vcmp.eq.s32.totalorder %v353, %v978
        %vm994 = vcmp.eq.s32.totalorder %v354, %v978
        %v995 = vsel %vm979, 1, 0
        %v996 = vsel %vm980, 1, 0
        %v997 = vsel %vm981, 1, 0
        %v998 = vsel %vm982, 1, 0
        %v999 = vsel %vm983, 1, 0
        %v1000 = vsel %vm984, 1, 0
        %v1001 = vsel %vm985, 1, 0
        %v1002 = vsel %vm986, 1, 0
        %v1003 = vsel %vm987, 1, 0
        %v1004 = vsel %vm988, 1, 0
        %v1005 = vsel %vm989, 1, 0
        %v1006 = vsel %vm990, 1, 0
        %v1007 = vsel %vm991, 1, 0
        %v1008 = vsel %vm992, 1, 0
        %v1009 = vsel %vm993, 1, 0
        %v1010 = vsel %vm994, 1, 0
        %v1011 = vcvt.s32.f32 %v995
        %v1012 = vcvt.s32.f32 %v996
        %v1013 = vcvt.s32.f32 %v997
        %v1014 = vcvt.s32.f32 %v998
        %v1015 = vcvt.s32.f32 %v999
        %v1016 = vcvt.s32.f32 %v1000
        %v1017 = vcvt.s32.f32 %v1001
        %v1018 = vcvt.s32.f32 %v1002
        %v1019 = vcvt.s32.f32 %v1003
        %v1020 = vcvt.s32.f32 %v1004
        %v1021 = vcvt.s32.f32 %v1005
        %v1022 = vcvt.s32.f32 %v1006
        %v1023 = vcvt.s32.f32 %v1007
        %v1024 = vcvt.s32.f32 %v1008
        %v1025 = vcvt.s32.f32 %v1009
        %v1026 = vcvt.s32.f32 %v1010
        %1027 = vmatprep.subr.mxu0 0.0
        %1028 = vmatpush1.msra.mxu0 %v1011
        %1029 = vmatprep.subr.mxu0 0.0
        %1030 = vmatpush1.msra.mxu0 %v1012
        %1031 = vmatprep.subr.mxu0 0.0
        %1032 = vmatpush1.msra.mxu0 %v1013
        %1033 = vmatprep.subr.mxu0 0.0
        %1034 = vmatpush1.msra.mxu0 %v1014
        %1035 = vmatprep.subr.mxu0 0.0
        %1036 = vmatpush1.msra.mxu0 %v1015
        %1037 = vmatprep.subr.mxu0 0.0
        %1038 = vmatpush1.msra.mxu0 %v1016
        %1039 = vmatprep.subr.mxu0 0.0
        %1040 = vmatpush1.msra.mxu0 %v1017
        %1041 = vmatprep.subr.mxu0 0.0
        %1042 = vmatpush1.msra.mxu0 %v1018
        %1043 = vmatprep.subr.mxu0 0.0
        %1044 = vmatpush1.msra.mxu0 %v1019
        %1045 = vmatprep.subr.mxu0 0.0
        %1046 = vmatpush1.msra.mxu0 %v1020
        %1047 = vmatprep.subr.mxu0 0.0
        %1048 = vmatpush1.msra.mxu0 %v1021
        %1049 = vmatprep.subr.mxu0 0.0
        %1050 = vmatpush1.msra.mxu0 %v1022
        %1051 = vmatprep.subr.mxu0 0.0
        %1052 = vmatpush1.msra.mxu0 %v1023
        %1053 = vmatprep.subr.mxu0 0.0
        %1054 = vmatpush1.msra.mxu0 %v1024
        %1055 = vmatprep.subr.mxu0 0.0
        %1056 = vmatpush1.msra.mxu0 %v1025
        %1057 = vmatprep.subr.mxu0 0.0
        %1058 = vmatpush1.msra.mxu0 %v1026
        %1059 = vmatprep.subr.mxu0 0.0
        %1060 = vmatpush1.msra.mxu0 0.0
        %1061 = vmatprep.subr.mxu0 0.0
        %1062 = vmatpush1.msra.mxu0 0.0
        %1063 = vmatprep.subr.mxu0 0.0
        %1064 = vmatpush1.msra.mxu0 0.0
        %1065 = vmatprep.subr.mxu0 0.0
        %1066 = vmatpush1.msra.mxu0 0.0
        %1067 = vmatprep.subr.mxu0 0.0
        %1068 = vmatpush1.msra.mxu0 0.0
        %1069 = vmatprep.subr.mxu0 0.0
        %1070 = vmatpush1.msra.mxu0 0.0
        %1071 = vmatprep.subr.mxu0 0.0
        %1072 = vmatpush1.msra.mxu0 0.0
        %1073 = vmatprep.subr.mxu0 0.0
        %1074 = vmatpush1.msra.mxu0 0.0
        %1075 = vmatprep.subr.mxu0 0.0
        %1076 = vmatpush1.msra.mxu0 0.0
        %1077 = vmatprep.subr.mxu0 0.0
        %1078 = vmatpush1.msra.mxu0 0.0
        %1079 = vmatprep.subr.mxu0 0.0
        %1080 = vmatpush1.msra.mxu0 0.0
        %1081 = vmatprep.subr.mxu0 0.0
        %1082 = vmatpush1.msra.mxu0 0.0
        %1083 = vmatprep.subr.mxu0 0.0
        %1084 = vmatpush1.msra.mxu0 0.0
        %1085 = vmatprep.subr.mxu0 0.0
        %1086 = vmatpush1.msra.mxu0 0.0
        %1087 = vmatprep.subr.mxu0 0.0
        %1088 = vmatpush1.msra.mxu0 0.0
        %1089 = vmatprep.subr.mxu0 0.0
        %1090 = vmatpush1.msra.mxu0 0.0
        %1091 = vmatprep.mubr.f32.mxu0 0.0
        %1092 = vmatmul.mubr.f32.gmra.mrb[0].mxu0 %v333
        %v1093 = vpop.f32.mrb[0].mxu0
        %v1094 = vadd.f32 0.0, %v1093
        %v1095 = vpop.f32.mrb[0].mxu0
        %1096 = vdwg.mxu0
        %v1097 = vmax.f32 %v973, %v1094
        %v1098 = vld [vmem:[%s236 + $0x6] sm:$0x1]
        %v1099 = vlaneseq
        %v1100 = vshrl.u32 %v1099, 7
        %v1101 = vsub.s32 0, %v1100
        %v1102 = vrot.slane %v1098, %v1101
        %vm1103 = vcmp.eq.s32.totalorder %v339, %v1102
        %vm1104 = vcmp.eq.s32.totalorder %v340, %v1102
        %vm1105 = vcmp.eq.s32.totalorder %v341, %v1102
        %vm1106 = vcmp.eq.s32.totalorder %v342, %v1102
        %vm1107 = vcmp.eq.s32.totalorder %v343, %v1102
        %vm1108 = vcmp.eq.s32.totalorder %v344, %v1102
        %vm1109 = vcmp.eq.s32.totalorder %v345, %v1102
        %vm1110 = vcmp.eq.s32.totalorder %v346, %v1102
        %vm1111 = vcmp.eq.s32.totalorder %v347, %v1102
        %vm1112 = vcmp.eq.s32.totalorder %v348, %v1102
        %vm1113 = vcmp.eq.s32.totalorder %v349, %v1102
        %vm1114 = vcmp.eq.s32.totalorder %v350, %v1102
        %vm1115 = vcmp.eq.s32.totalorder %v351, %v1102
        %vm1116 = vcmp.eq.s32.totalorder %v352, %v1102
        %vm1117 = vcmp.eq.s32.totalorder %v353, %v1102
        %vm1118 = vcmp.eq.s32.totalorder %v354, %v1102
        %v1119 = vsel %vm1103, 1, 0
        %v1120 = vsel %vm1104, 1, 0
        %v1121 = vsel %vm1105, 1, 0
        %v1122 = vsel %vm1106, 1, 0
        %v1123 = vsel %vm1107, 1, 0
        %v1124 = vsel %vm1108, 1, 0
        %v1125 = vsel %vm1109, 1, 0
        %v1126 = vsel %vm1110, 1, 0
        %v1127 = vsel %vm1111, 1, 0
        %v1128 = vsel %vm1112, 1, 0
        %v1129 = vsel %vm1113, 1, 0
        %v1130 = vsel %vm1114, 1, 0
        %v1131 = vsel %vm1115, 1, 0
        %v1132 = vsel %vm1116, 1, 0
        %v1133 = vsel %vm1117, 1, 0
        %v1134 = vsel %vm1118, 1, 0
        %v1135 = vcvt.s32.f32 %v1119
        %v1136 = vcvt.s32.f32 %v1120
        %v1137 = vcvt.s32.f32 %v1121
        %v1138 = vcvt.s32.f32 %v1122
        %v1139 = vcvt.s32.f32 %v1123
        %v1140 = vcvt.s32.f32 %v1124
        %v1141 = vcvt.s32.f32 %v1125
        %v1142 = vcvt.s32.f32 %v1126
        %v1143 = vcvt.s32.f32 %v1127
        %v1144 = vcvt.s32.f32 %v1128
        %v1145 = vcvt.s32.f32 %v1129
        %v1146 = vcvt.s32.f32 %v1130
        %v1147 = vcvt.s32.f32 %v1131
        %v1148 = vcvt.s32.f32 %v1132
        %v1149 = vcvt.s32.f32 %v1133
        %v1150 = vcvt.s32.f32 %v1134
        %1151 = vmatprep.subr.mxu0 0.0
        %1152 = vmatpush1.msra.mxu0 %v1135
        %1153 = vmatprep.subr.mxu0 0.0
        %1154 = vmatpush1.msra.mxu0 %v1136
        %1155 = vmatprep.subr.mxu0 0.0
        %1156 = vmatpush1.msra.mxu0 %v1137
        %1157 = vmatprep.subr.mxu0 0.0
        %1158 = vmatpush1.msra.mxu0 %v1138
        %1159 = vmatprep.subr.mxu0 0.0
        %1160 = vmatpush1.msra.mxu0 %v1139
        %1161 = vmatprep.subr.mxu0 0.0
        %1162 = vmatpush1.msra.mxu0 %v1140
        %1163 = vmatprep.subr.mxu0 0.0
        %1164 = vmatpush1.msra.mxu0 %v1141
        %1165 = vmatprep.subr.mxu0 0.0
        %1166 = vmatpush1.msra.mxu0 %v1142
        %1167 = vmatprep.subr.mxu0 0.0
        %1168 = vmatpush1.msra.mxu0 %v1143
        %1169 = vmatprep.subr.mxu0 0.0
        %1170 = vmatpush1.msra.mxu0 %v1144
        %1171 = vmatprep.subr.mxu0 0.0
        %1172 = vmatpush1.msra.mxu0 %v1145
        %1173 = vmatprep.subr.mxu0 0.0
        %1174 = vmatpush1.msra.mxu0 %v1146
        %1175 = vmatprep.subr.mxu0 0.0
        %1176 = vmatpush1.msra.mxu0 %v1147
        %1177 = vmatprep.subr.mxu0 0.0
        %1178 = vmatpush1.msra.mxu0 %v1148
        %1179 = vmatprep.subr.mxu0 0.0
        %1180 = vmatpush1.msra.mxu0 %v1149
        %1181 = vmatprep.subr.mxu0 0.0
        %1182 = vmatpush1.msra.mxu0 %v1150
        %1183 = vmatprep.subr.mxu0 0.0
        %1184 = vmatpush1.msra.mxu0 0.0
        %1185 = vmatprep.subr.mxu0 0.0
        %1186 = vmatpush1.msra.mxu0 0.0
        %1187 = vmatprep.subr.mxu0 0.0
        %1188 = vmatpush1.msra.mxu0 0.0
        %1189 = vmatprep.subr.mxu0 0.0
        %1190 = vmatpush1.msra.mxu0 0.0
        %1191 = vmatprep.subr.mxu0 0.0
        %1192 = vmatpush1.msra.mxu0 0.0
        %1193 = vmatprep.subr.mxu0 0.0
        %1194 = vmatpush1.msra.mxu0 0.0
        %1195 = vmatprep.subr.mxu0 0.0
        %1196 = vmatpush1.msra.mxu0 0.0
        %1197 = vmatprep.subr.mxu0 0.0
        %1198 = vmatpush1.msra.mxu0 0.0
        %1199 = vmatprep.subr.mxu0 0.0
        %1200 = vmatpush1.msra.mxu0 0.0
        %1201 = vmatprep.subr.mxu0 0.0
        %1202 = vmatpush1.msra.mxu0 0.0
        %1203 = vmatprep.subr.mxu0 0.0
        %1204 = vmatpush1.msra.mxu0 0.0
        %1205 = vmatprep.subr.mxu0 0.0
        %1206 = vmatpush1.msra.mxu0 0.0
        %1207 = vmatprep.subr.mxu0 0.0
        %1208 = vmatpush1.msra.mxu0 0.0
        %1209 = vmatprep.subr.mxu0 0.0
        %1210 = vmatpush1.msra.mxu0 0.0
        %1211 = vmatprep.subr.mxu0 0.0
        %1212 = vmatpush1.msra.mxu0 0.0
        %1213 = vmatprep.subr.mxu0 0.0
        %1214 = vmatpush1.msra.mxu0 0.0
        %1215 = vmatprep.mubr.f32.mxu0 0.0
        %1216 = vmatmul.mubr.f32.gmra.mrb[0].mxu0 %v333
        %v1217 = vpop.f32.mrb[0].mxu0
        %v1218 = vadd.f32 0.0, %v1217
        %v1219 = vpop.f32.mrb[0].mxu0
        %1220 = vdwg.mxu0
        %v1221 = vmax.f32 %v1097, %v1218
        %v1222 = vld [vmem:[%s236 + $0x7] sm:$0x1]
        %v1223 = vlaneseq
        %v1224 = vshrl.u32 %v1223, 7
        %v1225 = vsub.s32 0, %v1224
        %v1226 = vrot.slane %v1222, %v1225
        %vm1227 = vcmp.eq.s32.totalorder %v339, %v1226
        %vm1228 = vcmp.eq.s32.totalorder %v340, %v1226
        %vm1229 = vcmp.eq.s32.totalorder %v341, %v1226
        %vm1230 = vcmp.eq.s32.totalorder %v342, %v1226
        %vm1231 = vcmp.eq.s32.totalorder %v343, %v1226
        %vm1232 = vcmp.eq.s32.totalorder %v344, %v1226
        %vm1233 = vcmp.eq.s32.totalorder %v345, %v1226
        %vm1234 = vcmp.eq.s32.totalorder %v346, %v1226
        %vm1235 = vcmp.eq.s32.totalorder %v347, %v1226
        %vm1236 = vcmp.eq.s32.totalorder %v348, %v1226
        %vm1237 = vcmp.eq.s32.totalorder %v349, %v1226
        %vm1238 = vcmp.eq.s32.totalorder %v350, %v1226
        %vm1239 = vcmp.eq.s32.totalorder %v351, %v1226
        %vm1240 = vcmp.eq.s32.totalorder %v352, %v1226
        %vm1241 = vcmp.eq.s32.totalorder %v353, %v1226
        %vm1242 = vcmp.eq.s32.totalorder %v354, %v1226
        %v1243 = vsel %vm1227, 1, 0
        %v1244 = vsel %vm1228, 1, 0
        %v1245 = vsel %vm1229, 1, 0
        %v1246 = vsel %vm1230, 1, 0
        %v1247 = vsel %vm1231, 1, 0
        %v1248 = vsel %vm1232, 1, 0
        %v1249 = vsel %vm1233, 1, 0
        %v1250 = vsel %vm1234, 1, 0
        %v1251 = vsel %vm1235, 1, 0
        %v1252 = vsel %vm1236, 1, 0
        %v1253 = vsel %vm1237, 1, 0
        %v1254 = vsel %vm1238, 1, 0
        %v1255 = vsel %vm1239, 1, 0
        %v1256 = vsel %vm1240, 1, 0
        %v1257 = vsel %vm1241, 1, 0
        %v1258 = vsel %vm1242, 1, 0
        %v1259 = vcvt.s32.f32 %v1243
        %v1260 = vcvt.s32.f32 %v1244
        %v1261 = vcvt.s32.f32 %v1245
        %v1262 = vcvt.s32.f32 %v1246
        %v1263 = vcvt.s32.f32 %v1247
        %v1264 = vcvt.s32.f32 %v1248
        %v1265 = vcvt.s32.f32 %v1249
        %v1266 = vcvt.s32.f32 %v1250
        %v1267 = vcvt.s32.f32 %v1251
        %v1268 = vcvt.s32.f32 %v1252
        %v1269 = vcvt.s32.f32 %v1253
        %v1270 = vcvt.s32.f32 %v1254
        %v1271 = vcvt.s32.f32 %v1255
        %v1272 = vcvt.s32.f32 %v1256
        %v1273 = vcvt.s32.f32 %v1257
        %v1274 = vcvt.s32.f32 %v1258
        %1275 = vmatprep.subr.mxu0 0.0
        %1276 = vmatpush1.msra.mxu0 %v1259
        %1277 = vmatprep.subr.mxu0 0.0
        %1278 = vmatpush1.msra.mxu0 %v1260
        %1279 = vmatprep.subr.mxu0 0.0
        %1280 = vmatpush1.msra.mxu0 %v1261
        %1281 = vmatprep.subr.mxu0 0.0
        %1282 = vmatpush1.msra.mxu0 %v1262
        %1283 = vmatprep.subr.mxu0 0.0
        %1284 = vmatpush1.msra.mxu0 %v1263
        %1285 = vmatprep.subr.mxu0 0.0
        %1286 = vmatpush1.msra.mxu0 %v1264
        %1287 = vmatprep.subr.mxu0 0.0
        %1288 = vmatpush1.msra.mxu0 %v1265
        %1289 = vmatprep.subr.mxu0 0.0
        %1290 = vmatpush1.msra.mxu0 %v1266
        %1291 = vmatprep.subr.mxu0 0.0
        %1292 = vmatpush1.msra.mxu0 %v1267
        %1293 = vmatprep.subr.mxu0 0.0
        %1294 = vmatpush1.msra.mxu0 %v1268
        %1295 = vmatprep.subr.mxu0 0.0
        %1296 = vmatpush1.msra.mxu0 %v1269
        %1297 = vmatprep.subr.mxu0 0.0
        %1298 = vmatpush1.msra.mxu0 %v1270
        %1299 = vmatprep.subr.mxu0 0.0
        %1300 = vmatpush1.msra.mxu0 %v1271
        %1301 = vmatprep.subr.mxu0 0.0
        %1302 = vmatpush1.msra.mxu0 %v1272
        %1303 = vmatprep.subr.mxu0 0.0
        %1304 = vmatpush1.msra.mxu0 %v1273
        %1305 = vmatprep.subr.mxu0 0.0
        %1306 = vmatpush1.msra.mxu0 %v1274
        %1307 = vmatprep.subr.mxu0 0.0
        %1308 = vmatpush1.msra.mxu0 0.0
        %1309 = vmatprep.subr.mxu0 0.0
        %1310 = vmatpush1.msra.mxu0 0.0
        %1311 = vmatprep.subr.mxu0 0.0
        %1312 = vmatpush1.msra.mxu0 0.0
        %1313 = vmatprep.subr.mxu0 0.0
        %1314 = vmatpush1.msra.mxu0 0.0
        %1315 = vmatprep.subr.mxu0 0.0
        %1316 = vmatpush1.msra.mxu0 0.0
        %1317 = vmatprep.subr.mxu0 0.0
        %1318 = vmatpush1.msra.mxu0 0.0
        %1319 = vmatprep.subr.mxu0 0.0
        %1320 = vmatpush1.msra.mxu0 0.0
        %1321 = vmatprep.subr.mxu0 0.0
        %1322 = vmatpush1.msra.mxu0 0.0
        %1323 = vmatprep.subr.mxu0 0.0
        %1324 = vmatpush1.msra.mxu0 0.0
        %1325 = vmatprep.subr.mxu0 0.0
        %1326 = vmatpush1.msra.mxu0 0.0
        %1327 = vmatprep.subr.mxu0 0.0
        %1328 = vmatpush1.msra.mxu0 0.0
        %1329 = vmatprep.subr.mxu0 0.0
        %1330 = vmatpush1.msra.mxu0 0.0
        %1331 = vmatprep.subr.mxu0 0.0
        %1332 = vmatpush1.msra.mxu0 0.0
        %1333 = vmatprep.subr.mxu0 0.0
        %1334 = vmatpush1.msra.mxu0 0.0
        %1335 = vmatprep.subr.mxu0 0.0
        %1336 = vmatpush1.msra.mxu0 0.0
        %1337 = vmatprep.subr.mxu0 0.0
        %1338 = vmatpush1.msra.mxu0 0.0
        %1339 = vmatprep.mubr.f32.mxu0 0.0
        %1340 = vmatmul.mubr.f32.gmra.mrb[0].mxu0 %v333
        %v1341 = vpop.f32.mrb[0].mxu0
        %v1342 = vadd.f32 0.0, %v1341
        %v1343 = vpop.f32.mrb[0].mxu0
        %1344 = vdwg.mxu0
        %v1345 = vmax.f32 %v1221, %v1342
        %v1346 = vadd.f32 %v289, %v1345
        %v1347 = vmax.f32 %v1346, 0.0
        %1348 = vst [vmem:[%s228] sm:$0xff] %v1347
        %s1349 = sand.u32 %s142, 1
        %s1350 = scalar_lea.sflag [#allocation3], %s1349
        %s1351 = sand.u32 %s142, 1
        %s1352 = smul.addr %s1351, 8
        %s1353 = scalar_lea.vmem [#allocation2], %s1352
        // Predicated region
        $region41: #{dyn_conv2d_forward.1} parent=39 // pred_check
          %p1354 = pneg %p152
        $region42: #{dyn_conv2d_forward.1} parent=39 // pred_check_branch
          %1356 = sbr.rel (%p1354) target = $region44
        $region43: #{dyn_conv2d_forward.1} parent=39 // pred_region
          %s1358 = ssub.s32 128, 128
          %1359 = vsyncadd %s1350, %s1358
          %s1360 = smul.addr %s19, 128
          %s1361 = scalar_lea.hbm %s5, %s1360
          %s1363 = sshll.u32 %s1353, 4
          %s1364 = int_to_ptr.vmem [resolvable:$true] %s1363
          %1366 = dma.vmem_to_hbm [thread:$0]  %s1364, 128, %s1361, %s1350
        $region44: #{dyn_conv2d_forward.1} parent=39 // pred_fallthru
          _
      $region40: #{dyn_conv2d_forward.1} parent=5 // pred_fallthru
        _
      %p1367 = scmp.le.s32.totalorder 2, %s14
      // Predicated region
      $region45: #{dyn_conv2d_forward.1} parent=5 // pred_check
        %p1368 = pneg %p1367
      $region46: #{dyn_conv2d_forward.1} parent=5 // pred_check_branch
        %1370 = sbr.rel (%p1368) target = $region48
      $region47: #{dyn_conv2d_forward.1} parent=5 // pred_region
        %s1371 = ssub.s32 %s14, 2
        // Predicated region
        $region49: #{dyn_conv2d_forward.1} parent=47 // pred_check
          %p1372 = pneg %p158
        $region50: #{dyn_conv2d_forward.1} parent=47 // pred_check_branch
          %1374 = sbr.rel (%p1372) target = $region52
        $region51: #{dyn_conv2d_forward.1} parent=47 // pred_region
          %s1375 = sand.u32 %s143, 1
          %s1376 = scalar_lea.sflag [#allocation3], %s1375
          %s1377 = sand.u32 %s143, 1
          %s1378 = smul.addr %s1377, 8
          %s1379 = scalar_lea.vmem [#allocation2], %s1378
          %1380 = dma.done %s1376, 128
        $region52: #{dyn_conv2d_forward.1} parent=47 // pred_fallthru
          _
      $region48: #{dyn_conv2d_forward.1} parent=5 // pred_fallthru
        _
    $region6: #{dyn_conv2d_forward.1} parent=1 // loop_footer
      %s18 = sadd.s32 1, %s14
    $region7: #{dyn_conv2d_forward.1} parent=1 // loop_footer_branch
      %13 = sbr.rel target = $region3
    $region8: #{dyn_conv2d_forward.1} parent=1 // loop_exit
      _
    %1381 = vsyncpa [#allocation3], 1
    %s1382 = scalar_lea.sflag [#allocation3], 1
    %1383 = vsyncpa %s1382, 1

</llo_original>
